<compile_context>
chip_gen: v6e
topology: v6e:2x2x1
jax: 0.10.0
libtpu: 0.0.40
codegen_flags: <defaults>
</compile_context>

<pallas_src>
import jax
import jax.numpy as jnp
from jax.experimental import pallas as pl
from jax.experimental.pallas import tpu as pltpu

INPUT_DIM = 724
REDUCED_DIM = 128
FC_DIM = 64
OUT_DIM = 1
NEG_SLOPE = 0.1


def _two_fc_kernel(x_ref, w01_ref, w2_ref, w3_ref, o_ref):
    # Cast the activation tile to the weight dtype for the MXU (cheap VPU op,
    # hidden under the HBM-bound x stream); accumulate in f32.
    x = x_ref[...].astype(w01_ref.dtype)
    # fused reduced_rgb + fc1: (tm, 724) @ (724, 64) -> (tm, 64)
    h = jnp.dot(x, w01_ref[...], preferred_element_type=jnp.float32)
    # dropout1 (identity in eval) + LeakyReLU(0.1), in f32
    h = jnp.where(h > 0, h, NEG_SLOPE * h)
    # fc2: (tm, 64) @ (64, 64) -> (tm, 64)
    h = jnp.dot(h.astype(w2_ref.dtype), w2_ref[...],
                preferred_element_type=jnp.float32)
    # dropout2 (identity in eval) + LeakyReLU(0.1)
    h = jnp.where(h > 0, h, NEG_SLOPE * h)
    # class_dim: per-row dot with the single weight row on VPU + XLU
    # (avoids an N=1 MXU matmul that would waste 127/255 output lanes).
    w3 = w3_ref[...].astype(jnp.float32)  # (1, 64)
    o_ref[...] = jnp.sum(h * w3, axis=-1, keepdims=True).astype(o_ref.dtype)


def _round_up(v, m):
    return (v + m - 1) // m * m


def two_fc_forward(x, w0_t, w1_t, w2_t, w3_t, *, tile_m=512,
                   compute_dtype=jnp.bfloat16):
    """Fused eval-mode forward.

    x:    (B, 724) float (streamed in its native dtype)
    wK_t: transposed PyTorch Linear weights, i.e. (in_dim, out_dim):
          w0_t (724,128), w1_t (128,64), w2_t (64,64), w3_t (64,1)
    compute_dtype: dtype of the resident weights / MXU operands.
    """
    B, D = x.shape
    assert D == INPUT_DIM

    # Fold the first two linears (exact: no nonlinearity between them), in f32.
    w01 = jnp.dot(w0_t.astype(jnp.float32), w1_t.astype(jnp.float32),
                  preferred_element_type=jnp.float32)            # (724, 64)

    # Only the tiny, VMEM-resident weights are cast; x streams as-is.
    w01_c = w01.astype(compute_dtype)
    w2_c = w2_t.astype(compute_dtype)
    w3_row = w3_t.reshape(1, FC_DIM).astype(jnp.float32)         # tiny, keep f32

    # Batch tiling: clamp tile_m to the (8-aligned) batch; ragged tail handled
    # by Pallas block padding (per-row math only, OOB output rows are masked).
    tile_m = max(8, _round_up(min(tile_m, _round_up(B, 8)), 8))
    grid = (pl.cdiv(B, tile_m),)

    out = pl.pallas_call(
        _two_fc_kernel,
        out_shape=jax.ShapeDtypeStruct((B, OUT_DIM), jnp.float32),
        grid_spec=pltpu.PrefetchScalarGridSpec(
            num_scalar_prefetch=0,
            grid=grid,
            in_specs=[
                # batch-tiled activations (dominant HBM stream)
                pl.BlockSpec((tile_m, INPUT_DIM), lambda i: (i, 0)),
                # weights: full arrays, constant index -> resident across steps
                pl.BlockSpec((INPUT_DIM, FC_DIM), lambda i: (0, 0)),
                pl.BlockSpec((FC_DIM, FC_DIM), lambda i: (0, 0)),
                pl.BlockSpec((1, FC_DIM), lambda i: (0, 0)),
            ],
            out_specs=pl.BlockSpec((tile_m, OUT_DIM), lambda i: (i, 0)),
        ),
        compiler_params=pltpu.CompilerParams(
            dimension_semantics=("parallel",)),
    )(x, w01_c, w2_c, w3_row)

    return out


def reference_forward_unfused(x, w0_t, w1_t, w2_t, w3_t):
    """Original module chain (eval mode), pure f32."""
    h = x @ w0_t
    h = h @ w1_t
    h = jnp.where(h > 0, h, NEG_SLOPE * h)
    h = h @ w2_t
    h = jnp.where(h > 0, h, NEG_SLOPE * h)
    return h @ w3_t


def reference_forward_matched(x, w0_t, w1_t, w2_t, w3_t, compute_dtype):
    """Mirrors the wrapper/kernel math (folded W0@W1, casts, f32 accumulation)."""
    w01 = (w0_t.astype(jnp.float32) @ w1_t.astype(jnp.float32)).astype(compute_dtype)
    h = jnp.dot(x.astype(compute_dtype), w01, preferred_element_type=jnp.float32)
    h = jnp.where(h > 0, h, NEG_SLOPE * h)
    h = jnp.dot(h.astype(compute_dtype), w2_t.astype(compute_dtype),
                preferred_element_type=jnp.float32)
    h = jnp.where(h > 0, h, NEG_SLOPE * h)
    return jnp.sum(h * w3_t.reshape(1, FC_DIM).astype(jnp.float32),
                   axis=-1, keepdims=True)


if __name__ == "__main__":
    key = jax.random.PRNGKey(0)
    kx, k0, k1, k2, k3 = jax.random.split(key, 5)

    B = 300  # deliberately NOT a multiple of tile_m to exercise the ragged tail
    x = jax.random.normal(kx, (B, INPUT_DIM), dtype=jnp.float32)

    # Deterministic synthetic weights in the pre-transposed (in, out) form.
    w0_t = jax.random.normal(k0, (INPUT_DIM, REDUCED_DIM), dtype=jnp.float32) * 0.02
    w1_t = jax.random.normal(k1, (REDUCED_DIM, FC_DIM), dtype=jnp.float32) * 0.05
    w2_t = jax.random.normal(k2, (FC_DIM, FC_DIM), dtype=jnp.float32) * 0.05
    w3_t = jax.random.normal(k3, (FC_DIM, OUT_DIM), dtype=jnp.float32) * 0.1

    # f32 path: must match the original (unfolded) module chain tightly.
    # tile_m=128 -> grid of 3 with a ragged final block (244..299 valid rows).
    out_f32 = jax.block_until_ready(
        two_fc_forward(x, w0_t, w1_t, w2_t, w3_t,
                       tile_m=128, compute_dtype=jnp.float32))
    ref_f32 = reference_forward_unfused(x, w0_t, w1_t, w2_t, w3_t)
    assert out_f32.shape == (B, OUT_DIM)
    assert jnp.allclose(out_f32, ref_f32, atol=2e-4, rtol=2e-3), "f32 mismatch"

    # bf16-weight path (default): compare against a matched-precision reference.
    out_bf16 = jax.block_until_ready(
        two_fc_forward(x, w0_t, w1_t, w2_t, w3_t, tile_m=128))
    ref_bf16 = reference_forward_matched(x, w0_t, w1_t, w2_t, w3_t, jnp.bfloat16)
    assert out_bf16.shape == (B, OUT_DIM)
    assert jnp.allclose(out_bf16, ref_bf16, atol=1e-2, rtol=1e-2), "bf16 mismatch"

    # Default tile_m=512 path (single clamped block for this small batch).
    out_def = jax.block_until_ready(two_fc_forward(x, w0_t, w1_t, w2_t, w3_t))
    assert out_def.shape == (B, OUT_DIM)
    assert jnp.allclose(out_def, ref_bf16, atol=1e-2, rtol=1e-2), "default-tile mismatch"

    print("KERNEL_OK")
</pallas_src>

<mosaic_0001>
module attributes {stable_mosaic.version = 11 : i64} {
  func.func @_two_fc_kernel(%arg0: i32, %arg1: memref<128x724xf32, #tpu.memory_space<vmem>>, %arg2: memref<724x64xf32, #tpu.memory_space<vmem>>, %arg3: memref<64x64xf32, #tpu.memory_space<vmem>>, %arg4: memref<1x64xf32, #tpu.memory_space<vmem>>, %arg5: memref<128x1xf32, #tpu.memory_space<vmem>>) attributes {dimension_semantics = [#tpu.dimension_semantics<parallel>], iteration_bounds = array<i64: 3>, scalar_prefetch = 0 : i64, scratch_operands = 0 : i64, tpu.core_type = #tpu.core_type<tc>, window_params = [{transform_indices = @transform_0, window_bounds = array<i64: 128, 724>}, {pipeline_mode = #tpu.pipeline_mode<synchronous>, transform_indices = @transform_1, window_bounds = array<i64: 724, 64>}, {pipeline_mode = #tpu.pipeline_mode<synchronous>, transform_indices = @transform_2, window_bounds = array<i64: 64, 64>}, {pipeline_mode = #tpu.pipeline_mode<synchronous>, transform_indices = @transform_3, window_bounds = array<i64: 1, 64>}, {transform_indices = @transform_4, window_bounds = array<i64: 128, 1>}]} {
    %c0 = arith.constant 0 : index
    %c0_0 = arith.constant 0 : index
    %0 = vector.load %arg1[%c0, %c0_0] : memref<128x724xf32, #tpu.memory_space<vmem>>, vector<128x724xf32>
    %c0_1 = arith.constant 0 : index
    %c0_2 = arith.constant 0 : index
    %1 = vector.load %arg2[%c0_1, %c0_2] : memref<724x64xf32, #tpu.memory_space<vmem>>, vector<724x64xf32>
    %cst = arith.constant dense<0.000000e+00> : vector<128x64xf32>
    %2 = tpu.matmul %0, %1, %cst {dimension_numbers = #tpu.dot_dimension_numbers<[1], [0], [0], [1], [0, 0, 1, 1], [], []>} : vector<128x724xf32>, vector<724x64xf32>, vector<128x64xf32> -> vector<128x64xf32>
    %cst_3 = arith.constant 0.000000e+00 : f32
    %3 = vector.broadcast %cst_3 : f32 to vector<128x64xf32>
    %4 = arith.cmpf ogt, %2, %3 : vector<128x64xf32>
    %cst_4 = arith.constant 1.000000e-01 : f32
    %5 = vector.broadcast %cst_4 : f32 to vector<128x64xf32>
    %6 = arith.mulf %5, %2 : vector<128x64xf32>
    %7 = arith.select %4, %2, %6 : vector<128x64xi1>, vector<128x64xf32>
    %c0_5 = arith.constant 0 : index
    %c0_6 = arith.constant 0 : index
    %8 = vector.load %arg3[%c0_5, %c0_6] : memref<64x64xf32, #tpu.memory_space<vmem>>, vector<64x64xf32>
    %cst_7 = arith.constant dense<0.000000e+00> : vector<128x64xf32>
    %9 = tpu.matmul %7, %8, %cst_7 {dimension_numbers = #tpu.dot_dimension_numbers<[1], [0], [0], [1], [0, 0, 1, 1], [], []>} : vector<128x64xf32>, vector<64x64xf32>, vector<128x64xf32> -> vector<128x64xf32>
    %cst_8 = arith.constant 0.000000e+00 : f32
    %10 = vector.broadcast %cst_8 : f32 to vector<128x64xf32>
    %11 = arith.cmpf ogt, %9, %10 : vector<128x64xf32>
    %cst_9 = arith.constant 1.000000e-01 : f32
    %12 = vector.broadcast %cst_9 : f32 to vector<128x64xf32>
    %13 = arith.mulf %12, %9 : vector<128x64xf32>
    %14 = arith.select %11, %9, %13 : vector<128x64xi1>, vector<128x64xf32>
    %c0_10 = arith.constant 0 : index
    %c0_11 = arith.constant 0 : index
    %15 = vector.load %arg4[%c0_10, %c0_11] : memref<1x64xf32, #tpu.memory_space<vmem>>, vector<1x64xf32>
    %16 = vector.broadcast %15 : vector<1x64xf32> to vector<128x64xf32>
    %17 = arith.mulf %14, %16 : vector<128x64xf32>
    %cst_12 = arith.constant dense<0.000000e+00> : vector<128xf32>
    %18 = vector.multi_reduction <add>, %17, %cst_12 [1] : vector<128x64xf32> to vector<128xf32>
    %19 = vector.shape_cast %18 : vector<128xf32> to vector<128x1xf32>
    %c0_13 = arith.constant 0 : index
    %c0_14 = arith.constant 0 : index
    %20 = vector.load %arg5[%c0_13, %c0_14] : memref<128x1xf32, #tpu.memory_space<vmem>>, vector<128x1xf32>
    tpu.vector_store %arg5[%c0_13, %c0_14], %19 {strides = array<i32>} : memref<128x1xf32, #tpu.memory_space<vmem>>, vector<128x1xf32>,
    return
  }
  func.func @transform_0(%arg0: i32) -> (i32, i32) {
    %c0_i32 = arith.constant 0 : i32
    %c0_i32_0 = arith.constant 0 : i32
    return %arg0, %c0_i32 : i32, i32
  }
  func.func @transform_1(%arg0: i32) -> (i32, i32) {
    %c0_i32 = arith.constant 0 : i32
    %c0_i32_0 = arith.constant 0 : i32
    %c0_i32_1 = arith.constant 0 : i32
    return %c0_i32, %c0_i32_0 : i32, i32
  }
  func.func @transform_2(%arg0: i32) -> (i32, i32) {
    %c0_i32 = arith.constant 0 : i32
    %c0_i32_0 = arith.constant 0 : i32
    %c0_i32_1 = arith.constant 0 : i32
    return %c0_i32, %c0_i32_0 : i32, i32
  }
  func.func @transform_3(%arg0: i32) -> (i32, i32) {
    %c0_i32 = arith.constant 0 : i32
    %c0_i32_0 = arith.constant 0 : i32
    %c0_i32_1 = arith.constant 0 : i32
    return %c0_i32, %c0_i32_0 : i32, i32
  }
  func.func @transform_4(%arg0: i32) -> (i32, i32) {
    %c0_i32 = arith.constant 0 : i32
    %c0_i32_0 = arith.constant 0 : i32
    return %arg0, %c0_i32 : i32, i32
  }
}

</mosaic_0001>

<llo_original>
// kernel: tpu_custom_call.1
$region0: #{tpu_custom_call.1}
  #allocation0 [shape = 'u32[]', space=smem, size = 0x4, offset = 0x4, fixed_abs, tag = 'smem constant byte address 0x4 - core index']
  #allocation1 [shape = 'u32[144,128]{1,0:T(1,128)}', space=vmem, size = 0x12000, scoped, tag = 'internal scratch']
  %s0 = inlined_call_operand.hbm [shape: f32[300,724], index: 0, kind: input, shape index: {}]
  %s1 = inlined_call_operand.vmem [shape: f32[724,64], index: 1, kind: input, shape index: {}]
  %s2 = inlined_call_operand.vmem [shape: f32[64,64], index: 2, kind: input, shape index: {}]
  %s3 = inlined_call_operand.vmem [shape: f32[1,64], index: 3, kind: input, shape index: {}]
  %s4 = inlined_call_operand.vmem [shape: f32[300,1], index: 4, kind: output, shape index: {}]
  %s5 = sld [smem:[#allocation0]]
  $region101: #{tpu_custom_call.1} parent=0
    _
  %s7 = ssub.s32 1, %s5
  %s8 = scalar_select 0, %s7, %s5
  $region1: #{tpu_custom_call.1} parent=0
    #allocation2 [shape = 'u8[786432]{0}', space=vmem, size = 0xc0000, scoped, tag = 'input window, operand 0']
    #allocation3 [shape = 's32[2]{0}', space=sflag, size = 0x8, scoped, tag = 'scoped memory for tpu_custom_call.1']
    #allocation4 [shape = 'u8[131072]{0}', space=vmem, size = 0x20000, scoped, tag = 'output window, operand 0']
    %9 = vsyncpa [#allocation3], 0
    %s10 = scalar_lea.sflag [#allocation3], 1
    %11 = vsyncpa %s10, 0
    loop: start=0, step=1, limit=5
    $region2: #{tpu_custom_call.1} parent=1 // loop_pre_header
      _
    $region3: #{tpu_custom_call.1} parent=1 // loop_header
      %s13 = sphi 0, %s17
      %p14 = scmp.ge.s32.totalorder %s13, 5
      %s23 = sphi 0, %s25
      %s26 = sphi 0, %s23
      %s27 = sphi 0, %s26
      %s43 = sphi 0, %s27
      %s47 = sphi 0, %s47
      %s49 = sphi 0, %s47
      %s50 = sphi 0, %s49
      %s64 = sphi 0, %s50
      %s68 = sphi 0, %s68
      %s70 = sphi 0, %s68
      %s71 = sphi 0, %s70
      %s85 = sphi 0, %s71
      %s89 = sphi 0, %s89
      %s91 = sphi 0, %s89
      %s92 = sphi 0, %s91
      %s106 = sphi 0, %s92
      %s112 = sphi 0, %s114
      %s115 = sphi 0, %s112
      %s116 = sphi 0, %s115
      %s132 = sphi 0, %s116
    $region4: #{tpu_custom_call.1} parent=1 // loop_header_branch
      %16 = sbr.rel (%p14) target = $region8
    $region5: #{tpu_custom_call.1} parent=1 // loop_body
      %s18 = ssub.s32 %s13, 1
      %s19 = ssub.s32 %s13, 2
      %s20 = sadd.s32 %s13, 1
      %s21 = ssub.s32 %s13, %s20
      %p22 = scmp.eq.s32.totalorder %s21, 0
      %s24 = sadd.s32 %s23, 1
      %s25 = scalar_select %p22, %s23, %s24
      %p28 = pneg %p22
      %p29 = scmp.eq.s32.totalorder %s13, 2
      %p30 = por %p28, %p29
      %p31 = scmp.ne.s32.totalorder %s23, %s26
      %p32 = scmp.eq.s32.totalorder %s13, 0
      %p33 = por %p31, %p32
      %p34 = scmp.ne.s32.totalorder %s23, %s26
      %p35 = scmp.eq.s32.totalorder %s18, 2
      %p36 = por %p34, %p35
      %p37 = scmp.ne.s32.totalorder %s26, %s27
      %p38 = scmp.eq.s32.totalorder %s18, 0
      %p39 = por %p37, %p38
      %p40 = scmp.ne.s32.totalorder %s26, %s27
      %p41 = scmp.eq.s32.totalorder %s19, 2
      %p42 = por %p40, %p41
      %p44 = scmp.ne.s32.totalorder %s27, %s43
      %p45 = scmp.eq.s32.totalorder %s19, 0
      %p46 = por %p44, %p45
      %s48 = sadd.s32 %s47, 1
      %p51 = scmp.eq.s32.totalorder %s13, 2
      %p52 = scmp.ne.s32.totalorder %s47, %s49
      %p53 = scmp.eq.s32.totalorder %s13, 0
      %p54 = por %p52, %p53
      %p55 = scmp.ne.s32.totalorder %s47, %s49
      %p56 = scmp.eq.s32.totalorder %s18, 2
      %p57 = por %p55, %p56
      %p58 = scmp.ne.s32.totalorder %s49, %s50
      %p59 = scmp.eq.s32.totalorder %s18, 0
      %p60 = por %p58, %p59
      %p61 = scmp.ne.s32.totalorder %s49, %s50
      %p62 = scmp.eq.s32.totalorder %s19, 2
      %p63 = por %p61, %p62
      %p65 = scmp.ne.s32.totalorder %s50, %s64
      %p66 = scmp.eq.s32.totalorder %s19, 0
      %p67 = por %p65, %p66
      %s69 = sadd.s32 %s68, 1
      %p72 = scmp.eq.s32.totalorder %s13, 2
      %p73 = scmp.ne.s32.totalorder %s68, %s70
      %p74 = scmp.eq.s32.totalorder %s13, 0
      %p75 = por %p73, %p74
      %p76 = scmp.ne.s32.totalorder %s68, %s70
      %p77 = scmp.eq.s32.totalorder %s18, 2
      %p78 = por %p76, %p77
      %p79 = scmp.ne.s32.totalorder %s70, %s71
      %p80 = scmp.eq.s32.totalorder %s18, 0
      %p81 = por %p79, %p80
      %p82 = scmp.ne.s32.totalorder %s70, %s71
      %p83 = scmp.eq.s32.totalorder %s19, 2
      %p84 = por %p82, %p83
      %p86 = scmp.ne.s32.totalorder %s71, %s85
      %p87 = scmp.eq.s32.totalorder %s19, 0
      %p88 = por %p86, %p87
      %s90 = sadd.s32 %s89, 1
      %p93 = scmp.eq.s32.totalorder %s13, 2
      %p94 = scmp.ne.s32.totalorder %s89, %s91
      %p95 = scmp.eq.s32.totalorder %s13, 0
      %p96 = por %p94, %p95
      %p97 = scmp.ne.s32.totalorder %s89, %s91
      %p98 = scmp.eq.s32.totalorder %s18, 2
      %p99 = por %p97, %p98
      %p100 = scmp.ne.s32.totalorder %s91, %s92
      %p101 = scmp.eq.s32.totalorder %s18, 0
      %p102 = por %p100, %p101
      %p103 = scmp.ne.s32.totalorder %s91, %s92
      %p104 = scmp.eq.s32.totalorder %s19, 2
      %p105 = por %p103, %p104
      %p107 = scmp.ne.s32.totalorder %s92, %s106
      %p108 = scmp.eq.s32.totalorder %s19, 0
      %p109 = por %p107, %p108
      %s110 = ssub.s32 %s13, %s20
      %p111 = scmp.eq.s32.totalorder %s110, 0
      %s113 = sadd.s32 %s112, 1
      %s114 = scalar_select %p111, %s112, %s113
      %p117 = pneg %p111
      %p118 = scmp.eq.s32.totalorder %s13, 2
      %p119 = por %p117, %p118
      %p120 = scmp.ne.s32.totalorder %s112, %s115
      %p121 = scmp.eq.s32.totalorder %s13, 0
      %p122 = por %p120, %p121
      %p123 = scmp.ne.s32.totalorder %s112, %s115
      %p124 = scmp.eq.s32.totalorder %s18, 2
      %p125 = por %p123, %p124
      %p126 = scmp.ne.s32.totalorder %s115, %s116
      %p127 = scmp.eq.s32.totalorder %s18, 0
      %p128 = por %p126, %p127
      %p129 = scmp.ne.s32.totalorder %s115, %s116
      %p130 = scmp.eq.s32.totalorder %s19, 2
      %p131 = por %p129, %p130
      %p133 = scmp.ne.s32.totalorder %s116, %s132
      %p134 = scmp.eq.s32.totalorder %s19, 0
      %p135 = por %p133, %p134
      %p136 = scmp.le.s32.totalorder 1, %s13
      %p137 = scmp.lt.s32.totalorder %s13, 4
      %p138 = pnand %p136, %p137
      %p139 = pneg %p138
      // Predicated region
      $region9: #{tpu_custom_call.1} parent=5 // pred_check
        _
      $region10: #{tpu_custom_call.1} parent=5 // pred_check_branch
        %141 = sbr.rel (%p138) target = $region12
      $region11: #{tpu_custom_call.1} parent=5 // pred_region
        %s142 = ssub.s32 %s13, 1
        // Predicated region
        $region13: #{tpu_custom_call.1} parent=11 // pred_check
          %p143 = pneg %p60
        $region14: #{tpu_custom_call.1} parent=11 // pred_check_branch
          %145 = sbr.rel (%p143) target = $region16
        $region15: #{tpu_custom_call.1} parent=11 // pred_region
          _
        $region16: #{tpu_custom_call.1} parent=11 // pred_fallthru
          _
        // Predicated region
        $region17: #{tpu_custom_call.1} parent=11 // pred_check
          %p146 = pneg %p81
        $region18: #{tpu_custom_call.1} parent=11 // pred_check_branch
          %148 = sbr.rel (%p146) target = $region20
        $region19: #{tpu_custom_call.1} parent=11 // pred_region
          _
        $region20: #{tpu_custom_call.1} parent=11 // pred_fallthru
          _
        // Predicated region
        $region21: #{tpu_custom_call.1} parent=11 // pred_check
          %p149 = pneg %p102
        $region22: #{tpu_custom_call.1} parent=11 // pred_check_branch
          %151 = sbr.rel (%p149) target = $region24
        $region23: #{tpu_custom_call.1} parent=11 // pred_region
          _
        $region24: #{tpu_custom_call.1} parent=11 // pred_fallthru
          _
      $region12: #{tpu_custom_call.1} parent=5 // pred_fallthru
        _
      %p152 = scmp.lt.s32.totalorder %s13, 3
      // Predicated region
      $region25: #{tpu_custom_call.1} parent=5 // pred_check
        %p153 = pneg %p152
      $region26: #{tpu_custom_call.1} parent=5 // pred_check_branch
        %155 = sbr.rel (%p153) target = $region28
      $region27: #{tpu_custom_call.1} parent=5 // pred_region
        // Predicated region
        $region29: #{tpu_custom_call.1} parent=27 // pred_check
          %p156 = pneg %p33
        $region30: #{tpu_custom_call.1} parent=27 // pred_check_branch
          %158 = sbr.rel (%p156) target = $region32
        $region31: #{tpu_custom_call.1} parent=27 // pred_region
          %s159 = sand.u32 %s23, 1
          %s160 = scalar_lea.sflag [#allocation3], %s159
          %s161 = sand.u32 %s23, 1
          %s162 = smul.addr %s161, 768
          %s163 = scalar_lea.vmem [#allocation2], %s162
          %s164 = smul.u32 16, %s13
          %s165 = ssub.s32 38, %s164
          %p166 = scmp.lt.s32.totalorder %s165, 16
          %s167 = scalar_select %p166, %s165, 16
          %s168 = smul.u32 128, %s167
          %s169 = smul.u32 %s168, 6
          %s171 = ssub.s32 12288, %s169
          %172 = vsyncadd %s160, %s171
          %p173 = scmp.ne.s32.totalorder 0, %s169
          %s174 = smul.addr %s164, 6
          %s175 = smul.addr %s174, 128
          %s176 = scalar_lea.hbm %s0, %s175
          %s177 = smul.u32 48, %s167
          %s178 = sshll.u32 %s163, 4
          %s179 = int_to_ptr.vmem [resolvable:$true] %s178
          %s180 = sshll.u32 %s177, 4
          %184 = dma.hbm_to_vmem [thread:$0]  (%p173), %s176, %s180, %s179, %s160, 768, 768, 48
        $region32: #{tpu_custom_call.1} parent=27 // pred_fallthru
          _
      $region28: #{tpu_custom_call.1} parent=5 // pred_fallthru
        _
      %p185 = scmp.le.s32.totalorder 1, %s13
      %p186 = scmp.lt.s32.totalorder %s13, 4
      %p187 = pnand %p185, %p186
      %p188 = pneg %p187
      // Predicated region
      $region33: #{tpu_custom_call.1} parent=5 // pred_check
        _
      $region34: #{tpu_custom_call.1} parent=5 // pred_check_branch
        %190 = sbr.rel (%p187) target = $region36
      $region35: #{tpu_custom_call.1} parent=5 // pred_region
        %s191 = ssub.s32 %s13, 1
        %s192 = sand.u32 %s26, 1
        %s193 = scalar_lea.sflag [#allocation3], %s192
        %s194 = sand.u32 %s26, 1
        %s195 = smul.addr %s194, 768
        %s196 = scalar_lea.vmem [#allocation2], %s195
        // Predicated region
        $region37: #{tpu_custom_call.1} parent=35 // pred_check
          %p197 = pneg %p39
        $region38: #{tpu_custom_call.1} parent=35 // pred_check_branch
          %199 = sbr.rel (%p197) target = $region40
        $region39: #{tpu_custom_call.1} parent=35 // pred_region
          %200 = dma.done %s193, 12288
        $region40: #{tpu_custom_call.1} parent=35 // pred_fallthru
          _
        %s201 = sand.u32 %s26, 1
        %s202 = scalar_lea.sflag [#allocation3], %s201
        %s203 = sand.u32 %s26, 1
        %s204 = smul.addr %s203, 768
        %s205 = scalar_lea.vmem [#allocation2], %s204
        %p206 = pneg %p39
        %p207 = pneg %p36
        %p208 = pneg %p60
        %p209 = pneg %p57
        %p210 = pneg %p81
        %p211 = pneg %p78
        %p212 = pneg %p102
        %p213 = pneg %p99
        %p214 = pneg %p128
        %p215 = pneg %p125
        %s216 = sand.u32 %s115, 1
        %s217 = sand.u32 %s115, 1
        %s218 = smul.addr %s217, 128
        %s219 = scalar_lea.vmem [#allocation4], %s218
        %s220 = smul.u32 16, %s18
        %s221 = ssub.s32 38, %s220
        %p222 = scmp.lt.s32.totalorder %s221, 16
        %s223 = scalar_select %p222, %s221, 16
        %s224 = smul.u32 128, %s223
        %s225 = smul.u32 %s224, 6
        %s226 = smul.u32 16, %s18
        %s227 = ssub.s32 38, %s226
        %p228 = scmp.lt.s32.totalorder %s227, 16
        %s229 = scalar_select %p228, %s227, 16
        %s230 = smul.u32 128, %s229
        %v231 = vld [vmem:[%s196] sm:$0xff]
        %v232 = vld [vmem:[%s196 + $0x8] sm:$0xff]
        %v233 = vld [vmem:[%s196 + $0x10] sm:$0xff]
        %v234 = vld [vmem:[%s196 + $0x18] sm:$0xff]
        %v235 = vld [vmem:[%s196 + $0x20] sm:$0xff]
        %v236 = vld [vmem:[%s196 + $0x28] sm:$0xff]
        %v237 = vld [vmem:[%s196 + $0x30] sm:$0xff]
        %v238 = vld [vmem:[%s196 + $0x38] sm:$0xff]
        %v239 = vld [vmem:[%s196 + $0x40] sm:$0xff]
        %v240 = vld [vmem:[%s196 + $0x48] sm:$0xff]
        %v241 = vld [vmem:[%s196 + $0x50] sm:$0xff]
        %v242 = vld [vmem:[%s196 + $0x58] sm:$0xff]
        %v243 = vld [vmem:[%s196 + $0x60] sm:$0xff]
        %v244 = vld [vmem:[%s196 + $0x68] sm:$0xff]
        %v245 = vld [vmem:[%s196 + $0x70] sm:$0xff]
        %v246 = vld [vmem:[%s196 + $0x78] sm:$0xff]
        %v247 = vld [vmem:[%s196 + $0x80] sm:$0xff]
        %v248 = vld [vmem:[%s196 + $0x88] sm:$0xff]
        %v249 = vld [vmem:[%s196 + $0x90] sm:$0xff]
        %v250 = vld [vmem:[%s196 + $0x98] sm:$0xff]
        %v251 = vld [vmem:[%s196 + $0xa0] sm:$0xff]
        %v252 = vld [vmem:[%s196 + $0xa8] sm:$0xff]
        %v253 = vld [vmem:[%s196 + $0xb0] sm:$0xff]
        %v254 = vld [vmem:[%s196 + $0xb8] sm:$0xff]
        %v255 = vld [vmem:[%s196 + $0xc0] sm:$0xff]
        %v256 = vld [vmem:[%s196 + $0xc8] sm:$0xff]
        %v257 = vld [vmem:[%s196 + $0xd0] sm:$0xff]
        %v258 = vld [vmem:[%s196 + $0xd8] sm:$0xff]
        %v259 = vld [vmem:[%s196 + $0xe0] sm:$0xff]
        %v260 = vld [vmem:[%s196 + $0xe8] sm:$0xff]
        %v261 = vld [vmem:[%s196 + $0xf0] sm:$0xff]
        %v262 = vld [vmem:[%s196 + $0xf8] sm:$0xff]
        %v263 = vld [vmem:[%s196 + $0x100] sm:$0xff]
        %v264 = vld [vmem:[%s196 + $0x108] sm:$0xff]
        %v265 = vld [vmem:[%s196 + $0x110] sm:$0xff]
        %v266 = vld [vmem:[%s196 + $0x118] sm:$0xff]
        %v267 = vld [vmem:[%s196 + $0x120] sm:$0xff]
        %v268 = vld [vmem:[%s196 + $0x128] sm:$0xff]
        %v269 = vld [vmem:[%s196 + $0x130] sm:$0xff]
        %v270 = vld [vmem:[%s196 + $0x138] sm:$0xff]
        %v271 = vld [vmem:[%s196 + $0x140] sm:$0xff]
        %v272 = vld [vmem:[%s196 + $0x148] sm:$0xff]
        %v273 = vld [vmem:[%s196 + $0x150] sm:$0xff]
        %v274 = vld [vmem:[%s196 + $0x158] sm:$0xff]
        %v275 = vld [vmem:[%s196 + $0x160] sm:$0xff]
        %v276 = vld [vmem:[%s196 + $0x168] sm:$0xff]
        %v277 = vld [vmem:[%s196 + $0x170] sm:$0xff]
        %v278 = vld [vmem:[%s196 + $0x178] sm:$0xff]
        %v279 = vld [vmem:[%s196 + $0x180] sm:$0xff]
        %v280 = vld [vmem:[%s196 + $0x188] sm:$0xff]
        %v281 = vld [vmem:[%s196 + $0x190] sm:$0xff]
        %v282 = vld [vmem:[%s196 + $0x198] sm:$0xff]
        %v283 = vld [vmem:[%s196 + $0x1a0] sm:$0xff]
        %v284 = vld [vmem:[%s196 + $0x1a8] sm:$0xff]
        %v285 = vld [vmem:[%s196 + $0x1b0] sm:$0xff]
        %v286 = vld [vmem:[%s196 + $0x1b8] sm:$0xff]
        %v287 = vld [vmem:[%s196 + $0x1c0] sm:$0xff]
        %v288 = vld [vmem:[%s196 + $0x1c8] sm:$0xff]
        %v289 = vld [vmem:[%s196 + $0x1d0] sm:$0xff]
        %v290 = vld [vmem:[%s196 + $0x1d8] sm:$0xff]
        %v291 = vld [vmem:[%s196 + $0x1e0] sm:$0xff]
        %v292 = vld [vmem:[%s196 + $0x1e8] sm:$0xff]
        %v293 = vld [vmem:[%s196 + $0x1f0] sm:$0xff]
        %v294 = vld [vmem:[%s196 + $0x1f8] sm:$0xff]
        %v295 = vld [vmem:[%s196 + $0x200] sm:$0xff]
        %v296 = vld [vmem:[%s196 + $0x208] sm:$0xff]
        %v297 = vld [vmem:[%s196 + $0x210] sm:$0xff]
        %v298 = vld [vmem:[%s196 + $0x218] sm:$0xff]
        %v299 = vld [vmem:[%s196 + $0x220] sm:$0xff]
        %v300 = vld [vmem:[%s196 + $0x228] sm:$0xff]
        %v301 = vld [vmem:[%s196 + $0x230] sm:$0xff]
        %v302 = vld [vmem:[%s196 + $0x238] sm:$0xff]
        %v303 = vld [vmem:[%s196 + $0x240] sm:$0xff]
        %v304 = vld [vmem:[%s196 + $0x248] sm:$0xff]
        %v305 = vld [vmem:[%s196 + $0x250] sm:$0xff]
        %v306 = vld [vmem:[%s196 + $0x258] sm:$0xff]
        %v307 = vld [vmem:[%s196 + $0x260] sm:$0xff]
        %v308 = vld [vmem:[%s196 + $0x268] sm:$0xff]
        %v309 = vld [vmem:[%s196 + $0x270] sm:$0xff]
        %v310 = vld [vmem:[%s196 + $0x278] sm:$0xff]
        %v311 = vld [vmem:[%s196 + $0x280] sm:$0xff]
        %v312 = vld [vmem:[%s196 + $0x288] sm:$0xff]
        %v313 = vld [vmem:[%s196 + $0x290] sm:$0xff]
        %v314 = vld [vmem:[%s196 + $0x298] sm:$0xff]
        %v315 = vld [vmem:[%s196 + $0x2a0] sm:$0xff]
        %v316 = vld [vmem:[%s196 + $0x2a8] sm:$0xff]
        %v317 = vld [vmem:[%s196 + $0x2b0] sm:$0xff]
        %v318 = vld [vmem:[%s196 + $0x2b8] sm:$0xff]
        %v319 = vld [vmem:[%s196 + $0x2c0] sm:$0xff]
        %v320 = vld [vmem:[%s196 + $0x2c8] sm:$0xff]
        %v321 = vld [vmem:[%s196 + $0x2d0] sm:$0xff]
        %v322 = vld [vmem:[%s196 + $0x2d8] sm:$0xff]
        %v323 = vld [vmem:[%s196 + $0x2e0] sm:$0xff]
        %v324 = vld [vmem:[%s196 + $0x2e8] sm:$0xff]
        %v325 = vld [vmem:[%s196 + $0x2f0] sm:$0xff]
        %v326 = vld [vmem:[%s196 + $0x2f8] sm:$0xff]
        %v327 = vld [vmem:[%s1] sm:$0xff]
        %v328 = vld [vmem:[%s1 + $0x8] sm:$0xff]
        %v329 = vld [vmem:[%s1 + $0x10] sm:$0xff]
        %v330 = vld [vmem:[%s1 + $0x18] sm:$0xff]
        %v331 = vld [vmem:[%s1 + $0x20] sm:$0xff]
        %v332 = vld [vmem:[%s1 + $0x28] sm:$0xff]
        %v333 = vld [vmem:[%s1 + $0x30] sm:$0xff]
        %v334 = vld [vmem:[%s1 + $0x38] sm:$0xff]
        %v335 = vld [vmem:[%s1 + $0x40] sm:$0xff]
        %v336 = vld [vmem:[%s1 + $0x48] sm:$0xff]
        %v337 = vld [vmem:[%s1 + $0x50] sm:$0xff]
        %v338 = vld [vmem:[%s1 + $0x58] sm:$0xff]
        %v339 = vld [vmem:[%s1 + $0x60] sm:$0xff]
        %v340 = vld [vmem:[%s1 + $0x68] sm:$0xff]
        %v341 = vld [vmem:[%s1 + $0x70] sm:$0xff]
        %v342 = vld [vmem:[%s1 + $0x78] sm:$0xff]
        %v343 = vld [vmem:[%s1 + $0x80] sm:$0xff]
        %v344 = vld [vmem:[%s1 + $0x88] sm:$0xff]
        %v345 = vld [vmem:[%s1 + $0x90] sm:$0xff]
        %v346 = vld [vmem:[%s1 + $0x98] sm:$0xff]
        %v347 = vld [vmem:[%s1 + $0xa0] sm:$0xff]
        %v348 = vld [vmem:[%s1 + $0xa8] sm:$0xff]
        %v349 = vld [vmem:[%s1 + $0xb0] sm:$0xff]
        %v350 = vld [vmem:[%s1 + $0xb8] sm:$0xff]
        %v351 = vld [vmem:[%s1 + $0xc0] sm:$0xff]
        %v352 = vld [vmem:[%s1 + $0xc8] sm:$0xff]
        %v353 = vld [vmem:[%s1 + $0xd0] sm:$0xff]
        %v354 = vld [vmem:[%s1 + $0xd8] sm:$0xff]
        %v355 = vld [vmem:[%s1 + $0xe0] sm:$0xff]
        %v356 = vld [vmem:[%s1 + $0xe8] sm:$0xff]
        %v357 = vld [vmem:[%s1 + $0xf0] sm:$0xff]
        %v358 = vld [vmem:[%s1 + $0xf8] sm:$0xff]
        %v359 = vld [vmem:[%s1 + $0x100] sm:$0xff]
        %v360 = vld [vmem:[%s1 + $0x108] sm:$0xff]
        %v361 = vld [vmem:[%s1 + $0x110] sm:$0xff]
        %v362 = vld [vmem:[%s1 + $0x118] sm:$0xff]
        %v363 = vld [vmem:[%s1 + $0x120] sm:$0xff]
        %v364 = vld [vmem:[%s1 + $0x128] sm:$0xff]
        %v365 = vld [vmem:[%s1 + $0x130] sm:$0xff]
        %v366 = vld [vmem:[%s1 + $0x138] sm:$0xff]
        %v367 = vld [vmem:[%s1 + $0x140] sm:$0xff]
        %v368 = vld [vmem:[%s1 + $0x148] sm:$0xff]
        %v369 = vld [vmem:[%s1 + $0x150] sm:$0xff]
        %v370 = vld [vmem:[%s1 + $0x158] sm:$0xff]
        %v371 = vld [vmem:[%s1 + $0x160] sm:$0xff]
        %v372 = vld [vmem:[%s1 + $0x168] sm:$0xff]
        %v373 = vld [vmem:[%s1 + $0x170] sm:$0xff]
        %v374 = vld [vmem:[%s1 + $0x178] sm:$0xff]
        %v375 = vld [vmem:[%s1 + $0x180] sm:$0xff]
        %v376 = vld [vmem:[%s1 + $0x188] sm:$0xff]
        %v377 = vld [vmem:[%s1 + $0x190] sm:$0xff]
        %v378 = vld [vmem:[%s1 + $0x198] sm:$0xff]
        %v379 = vld [vmem:[%s1 + $0x1a0] sm:$0xff]
        %v380 = vld [vmem:[%s1 + $0x1a8] sm:$0xff]
        %v381 = vld [vmem:[%s1 + $0x1b0] sm:$0xff]
        %v382 = vld [vmem:[%s1 + $0x1b8] sm:$0xff]
        %v383 = vld [vmem:[%s1 + $0x1c0] sm:$0xff]
        %v384 = vld [vmem:[%s1 + $0x1c8] sm:$0xff]
        %v385 = vld [vmem:[%s1 + $0x1d0] sm:$0xff]
        %v386 = vld [vmem:[%s1 + $0x1d8] sm:$0xff]
        %v387 = vld [vmem:[%s1 + $0x1e0] sm:$0xff]
        %v388 = vld [vmem:[%s1 + $0x1e8] sm:$0xff]
        %v389 = vld [vmem:[%s1 + $0x1f0] sm:$0xff]
        %v390 = vld [vmem:[%s1 + $0x1f8] sm:$0xff]
        %v391 = vld [vmem:[%s1 + $0x200] sm:$0xff]
        %v392 = vld [vmem:[%s1 + $0x208] sm:$0xff]
        %v393 = vld [vmem:[%s1 + $0x210] sm:$0xff]
        %v394 = vld [vmem:[%s1 + $0x218] sm:$0xff]
        %v395 = vld [vmem:[%s1 + $0x220] sm:$0xff]
        %v396 = vld [vmem:[%s1 + $0x228] sm:$0xff]
        %v397 = vld [vmem:[%s1 + $0x230] sm:$0xff]
        %v398 = vld [vmem:[%s1 + $0x238] sm:$0xff]
        %v399 = vld [vmem:[%s1 + $0x240] sm:$0xff]
        %v400 = vld [vmem:[%s1 + $0x248] sm:$0xff]
        %v401 = vld [vmem:[%s1 + $0x250] sm:$0xff]
        %v402 = vld [vmem:[%s1 + $0x258] sm:$0xff]
        %v403 = vld [vmem:[%s1 + $0x260] sm:$0xff]
        %v404 = vld [vmem:[%s1 + $0x268] sm:$0xff]
        %v405 = vld [vmem:[%s1 + $0x270] sm:$0xff]
        %v406 = vld [vmem:[%s1 + $0x278] sm:$0xff]
        %v407 = vld [vmem:[%s1 + $0x280] sm:$0xff]
        %v408 = vld [vmem:[%s1 + $0x288] sm:$0xff]
        %v409 = vld [vmem:[%s1 + $0x290] sm:$0xff]
        %v410 = vld [vmem:[%s1 + $0x298] sm:$0xff]
        %v411 = vld [vmem:[%s1 + $0x2a0] sm:$0xff]
        %v412 = vld [vmem:[%s1 + $0x2a8] sm:$0xff]
        %v413 = vld [vmem:[%s1 + $0x2b0] sm:$0xff]
        %v414 = vld [vmem:[%s1 + $0x2b8] sm:$0xff]
        %v415 = vld [vmem:[%s1 + $0x2c0] sm:$0xff]
        %v416 = vld [vmem:[%s1 + $0x2c8] sm:$0xff]
        %v417 = vld [vmem:[%s1 + $0x2d0] sm:$0xf]
        %vm418 = vcmask 687104
        %v420 = vsel %vm418, %v236, 0
        %v423 = vsel %vm418, %v242, 0
        %v426 = vsel %vm418, %v248, 0
        %v429 = vsel %vm418, %v254, 0
        %v432 = vsel %vm418, %v260, 0
        %v435 = vsel %vm418, %v266, 0
        %v438 = vsel %vm418, %v272, 0
        %v441 = vsel %vm418, %v278, 0
        %v444 = vsel %vm418, %v284, 0
        %v447 = vsel %vm418, %v290, 0
        %v450 = vsel %vm418, %v296, 0
        %v453 = vsel %vm418, %v302, 0
        %v456 = vsel %vm418, %v308, 0
        %v459 = vsel %vm418, %v314, 0
        %v462 = vsel %vm418, %v320, 0
        %v465 = vsel %vm418, %v326, 0
        %vm467 = vcmask 1043456
        %v469 = vsel %vm467, %v417, 0
        %471 = vmatprep.subr.mxu0 0.0
        %472 = vmatpush1.msra.mxu0 %v342
        %473 = vmatprep.subr.mxu0 0.0
        %474 = vmatpush1.msra.mxu0 %v341
        %475 = vmatprep.subr.mxu0 0.0
        %476 = vmatpush1.msra.mxu0 %v340
        %477 = vmatprep.subr.mxu0 0.0
        %478 = vmatpush1.msra.mxu0 %v339
        %479 = vmatprep.subr.mxu0 0.0
        %480 = vmatpush1.msra.mxu0 %v338
        %481 = vmatprep.subr.mxu0 0.0
        %482 = vmatpush1.msra.mxu0 %v337
        %483 = vmatprep.subr.mxu0 0.0
        %484 = vmatpush1.msra.mxu0 %v336
        %485 = vmatprep.subr.mxu0 0.0
        %486 = vmatpush1.msra.mxu0 %v335
        %487 = vmatprep.subr.mxu0 0.0
        %488 = vmatpush1.msra.mxu0 %v334
        %489 = vmatprep.subr.mxu0 0.0
        %490 = vmatpush1.msra.mxu0 %v333
        %491 = vmatprep.subr.mxu0 0.0
        %492 = vmatpush1.msra.mxu0 %v332
        %493 = vmatprep.subr.mxu0 0.0
        %494 = vmatpush1.msra.mxu0 %v331
        %495 = vmatprep.subr.mxu0 0.0
        %496 = vmatpush1.msra.mxu0 %v330
        %497 = vmatprep.subr.mxu0 0.0
        %498 = vmatpush1.msra.mxu0 %v329
        %499 = vmatprep.subr.mxu0 0.0
        %500 = vmatpush1.msra.mxu0 %v328
        %501 = vmatprep.subr.mxu0 0.0
        %502 = vmatpush1.msra.mxu0 %v327
        %503 = vmatprep.subr.mxu0 0.0
        %504 = vmatpush2.msra.mxu0 %v358
        %505 = vmatprep.subr.mxu0 0.0
        %506 = vmatpush2.msra.mxu0 %v357
        %507 = vmatprep.subr.mxu0 0.0
        %508 = vmatpush2.msra.mxu0 %v356
        %509 = vmatprep.subr.mxu0 0.0
        %510 = vmatpush2.msra.mxu0 %v355
        %511 = vmatprep.subr.mxu0 0.0
        %512 = vmatpush2.msra.mxu0 %v354
        %513 = vmatprep.subr.mxu0 0.0
        %514 = vmatpush2.msra.mxu0 %v353
        %515 = vmatprep.subr.mxu0 0.0
        %516 = vmatpush2.msra.mxu0 %v352
        %517 = vmatprep.subr.mxu0 0.0
        %518 = vmatpush2.msra.mxu0 %v351
        %519 = vmatprep.subr.mxu0 0.0
        %520 = vmatpush2.msra.mxu0 %v350
        %521 = vmatprep.subr.mxu0 0.0
        %522 = vmatpush2.msra.mxu0 %v349
        %523 = vmatprep.subr.mxu0 0.0
        %524 = vmatpush2.msra.mxu0 %v348
        %525 = vmatprep.subr.mxu0 0.0
        %526 = vmatpush2.msra.mxu0 %v347
        %527 = vmatprep.subr.mxu0 0.0
        %528 = vmatpush2.msra.mxu0 %v346
        %529 = vmatprep.subr.mxu0 0.0
        %530 = vmatpush2.msra.mxu0 %v345
        %531 = vmatprep.subr.mxu0 0.0
        %532 = vmatpush2.msra.mxu0 %v344
        %533 = vmatprep.subr.mxu0 0.0
        %534 = vmatpush2.msra.mxu0 %v343
        %535 = vmatprep.mubr.f32.mxu0 %v232
        %536 = vmatmul.mubr.f32.gmra.mxu0 %v231
        %v537 = vpop.f32.mrf.mxu0
        %v538 = vadd.f32 0.0, %v537
        %v539 = vpop.f32.mrf.mxu0
        %540 = vmatprep.mubr.f32.mxu0 %v238
        %541 = vmatmul.mubr.f32.gmra.mxu0 %v237
        %v542 = vpop.f32.mrf.mxu0
        %v543 = vadd.f32 0.0, %v542
        %v544 = vpop.f32.mrf.mxu0
        %545 = vmatprep.mubr.f32.mxu0 %v244
        %546 = vmatmul.mubr.f32.gmra.mxu0 %v243
        %v547 = vpop.f32.mrf.mxu0
        %v548 = vadd.f32 0.0, %v547
        %v549 = vpop.f32.mrf.mxu0
        %550 = vmatprep.mubr.f32.mxu0 %v250
        %551 = vmatmul.mubr.f32.gmra.mxu0 %v249
        %v552 = vpop.f32.mrf.mxu0
        %v553 = vadd.f32 0.0, %v552
        %v554 = vpop.f32.mrf.mxu0
        %555 = vmatprep.mubr.f32.mxu0 %v256
        %556 = vmatmul.mubr.f32.gmra.mxu0 %v255
        %v557 = vpop.f32.mrf.mxu0
        %v558 = vadd.f32 0.0, %v557
        %v559 = vpop.f32.mrf.mxu0
        %560 = vmatprep.mubr.f32.mxu0 %v262
        %561 = vmatmul.mubr.f32.gmra.mxu0 %v261
        %v562 = vpop.f32.mrf.mxu0
        %v563 = vadd.f32 0.0, %v562
        %v564 = vpop.f32.mrf.mxu0
        %565 = vmatprep.mubr.f32.mxu0 %v268
        %566 = vmatmul.mubr.f32.gmra.mxu0 %v267
        %v567 = vpop.f32.mrf.mxu0
        %v568 = vadd.f32 0.0, %v567
        %v569 = vpop.f32.mrf.mxu0
        %570 = vmatprep.mubr.f32.mxu0 %v274
        %571 = vmatmul.mubr.f32.gmra.mxu0 %v273
        %v572 = vpop.f32.mrf.mxu0
        %v573 = vadd.f32 0.0, %v572
        %v574 = vpop.f32.mrf.mxu0
        %575 = vmatprep.mubr.f32.mxu0 %v280
        %576 = vmatmul.mubr.f32.gmra.mxu0 %v279
        %v577 = vpop.f32.mrf.mxu0
        %v578 = vadd.f32 0.0, %v577
        %v579 = vpop.f32.mrf.mxu0
        %580 = vmatprep.mubr.f32.mxu0 %v286
        %581 = vmatmul.mubr.f32.gmra.mxu0 %v285
        %v582 = vpop.f32.mrf.mxu0
        %v583 = vadd.f32 0.0, %v582
        %v584 = vpop.f32.mrf.mxu0
        %585 = vmatprep.mubr.f32.mxu0 %v292
        %586 = vmatmul.mubr.f32.gmra.mxu0 %v291
        %v587 = vpop.f32.mrf.mxu0
        %v588 = vadd.f32 0.0, %v587
        %v589 = vpop.f32.mrf.mxu0
        %590 = vmatprep.mubr.f32.mxu0 %v298
        %591 = vmatmul.mubr.f32.gmra.mxu0 %v297
        %v592 = vpop.f32.mrf.mxu0
        %v593 = vadd.f32 0.0, %v592
        %v594 = vpop.f32.mrf.mxu0
        %595 = vmatprep.mubr.f32.mxu0 %v304
        %596 = vmatmul.mubr.f32.gmra.mxu0 %v303
        %v597 = vpop.f32.mrf.mxu0
        %v598 = vadd.f32 0.0, %v597
        %v599 = vpop.f32.mrf.mxu0
        %600 = vmatprep.mubr.f32.mxu0 %v310
        %601 = vmatmul.mubr.f32.gmra.mxu0 %v309
        %v602 = vpop.f32.mrf.mxu0
        %v603 = vadd.f32 0.0, %v602
        %v604 = vpop.f32.mrf.mxu0
        %605 = vmatprep.mubr.f32.mxu0 %v316
        %606 = vmatmul.mubr.f32.gmra.mxu0 %v315
        %v607 = vpop.f32.mrf.mxu0
        %v608 = vadd.f32 0.0, %v607
        %v609 = vpop.f32.mrf.mxu0
        %610 = vmatprep.mubr.f32.mxu0 %v322
        %611 = vmatmul.mubr.f32.gmra.mxu0 %v321
        %v612 = vpop.f32.mrf.mxu0
        %v613 = vadd.f32 0.0, %v612
        %v614 = vpop.f32.mrf.mxu0
        %615 = vdwg.mxu0
        %616 = vmatprep.subr.mxu0 0.0
        %617 = vmatpush1.msra.mxu0 %v374
        %618 = vmatprep.subr.mxu0 0.0
        %619 = vmatpush1.msra.mxu0 %v373
        %620 = vmatprep.subr.mxu0 0.0
        %621 = vmatpush1.msra.mxu0 %v372
        %622 = vmatprep.subr.mxu0 0.0
        %623 = vmatpush1.msra.mxu0 %v371
        %624 = vmatprep.subr.mxu0 0.0
        %625 = vmatpush1.msra.mxu0 %v370
        %626 = vmatprep.subr.mxu0 0.0
        %627 = vmatpush1.msra.mxu0 %v369
        %628 = vmatprep.subr.mxu0 0.0
        %629 = vmatpush1.msra.mxu0 %v368
        %630 = vmatprep.subr.mxu0 0.0
        %631 = vmatpush1.msra.mxu0 %v367
        %632 = vmatprep.subr.mxu0 0.0
        %633 = vmatpush1.msra.mxu0 %v366
        %634 = vmatprep.subr.mxu0 0.0
        %635 = vmatpush1.msra.mxu0 %v365
        %636 = vmatprep.subr.mxu0 0.0
        %637 = vmatpush1.msra.mxu0 %v364
        %638 = vmatprep.subr.mxu0 0.0
        %639 = vmatpush1.msra.mxu0 %v363
        %640 = vmatprep.subr.mxu0 0.0
        %641 = vmatpush1.msra.mxu0 %v362
        %642 = vmatprep.subr.mxu0 0.0
        %643 = vmatpush1.msra.mxu0 %v361
        %644 = vmatprep.subr.mxu0 0.0
        %645 = vmatpush1.msra.mxu0 %v360
        %646 = vmatprep.subr.mxu0 0.0
        %647 = vmatpush1.msra.mxu0 %v359
        %648 = vmatprep.subr.mxu0 0.0
        %649 = vmatpush2.msra.mxu0 %v390
        %650 = vmatprep.subr.mxu0 0.0
        %651 = vmatpush2.msra.mxu0 %v389
        %652 = vmatprep.subr.mxu0 0.0
        %653 = vmatpush2.msra.mxu0 %v388
        %654 = vmatprep.subr.mxu0 0.0
        %655 = vmatpush2.msra.mxu0 %v387
        %656 = vmatprep.subr.mxu0 0.0
        %657 = vmatpush2.msra.mxu0 %v386
        %658 = vmatprep.subr.mxu0 0.0
        %659 = vmatpush2.msra.mxu0 %v385
        %660 = vmatprep.subr.mxu0 0.0
        %661 = vmatpush2.msra.mxu0 %v384
        %662 = vmatprep.subr.mxu0 0.0
        %663 = vmatpush2.msra.mxu0 %v383
        %664 = vmatprep.subr.mxu0 0.0
        %665 = vmatpush2.msra.mxu0 %v382
        %666 = vmatprep.subr.mxu0 0.0
        %667 = vmatpush2.msra.mxu0 %v381
        %668 = vmatprep.subr.mxu0 0.0
        %669 = vmatpush2.msra.mxu0 %v380
        %670 = vmatprep.subr.mxu0 0.0
        %671 = vmatpush2.msra.mxu0 %v379
        %672 = vmatprep.subr.mxu0 0.0
        %673 = vmatpush2.msra.mxu0 %v378
        %674 = vmatprep.subr.mxu0 0.0
        %675 = vmatpush2.msra.mxu0 %v377
        %676 = vmatprep.subr.mxu0 0.0
        %677 = vmatpush2.msra.mxu0 %v376
        %678 = vmatprep.subr.mxu0 0.0
        %679 = vmatpush2.msra.mxu0 %v375
        %680 = vmatprep.mubr.f32.mxu0 %v234
        %681 = vmatmul.mubr.f32.gmra.mxu0 %v233
        %v682 = vpop.f32.mrf.mxu0
        %v683 = vadd.f32 %v538, %v682
        %v684 = vpop.f32.mrf.mxu0
        %685 = vmatprep.mubr.f32.mxu0 %v240
        %686 = vmatmul.mubr.f32.gmra.mxu0 %v239
        %v687 = vpop.f32.mrf.mxu0
        %v688 = vadd.f32 %v543, %v687
        %v689 = vpop.f32.mrf.mxu0
        %690 = vmatprep.mubr.f32.mxu0 %v246
        %691 = vmatmul.mubr.f32.gmra.mxu0 %v245
        %v692 = vpop.f32.mrf.mxu0
        %v693 = vadd.f32 %v548, %v692
        %v694 = vpop.f32.mrf.mxu0
        %695 = vmatprep.mubr.f32.mxu0 %v252
        %696 = vmatmul.mubr.f32.gmra.mxu0 %v251
        %v697 = vpop.f32.mrf.mxu0
        %v698 = vadd.f32 %v553, %v697
        %v699 = vpop.f32.mrf.mxu0
        %700 = vmatprep.mubr.f32.mxu0 %v258
        %701 = vmatmul.mubr.f32.gmra.mxu0 %v257
        %v702 = vpop.f32.mrf.mxu0
        %v703 = vadd.f32 %v558, %v702
        %v704 = vpop.f32.mrf.mxu0
        %705 = vmatprep.mubr.f32.mxu0 %v264
        %706 = vmatmul.mubr.f32.gmra.mxu0 %v263
        %v707 = vpop.f32.mrf.mxu0
        %v708 = vadd.f32 %v563, %v707
        %v709 = vpop.f32.mrf.mxu0
        %710 = vmatprep.mubr.f32.mxu0 %v270
        %711 = vmatmul.mubr.f32.gmra.mxu0 %v269
        %v712 = vpop.f32.mrf.mxu0
        %v713 = vadd.f32 %v568, %v712
        %v714 = vpop.f32.mrf.mxu0
        %715 = vmatprep.mubr.f32.mxu0 %v276
        %716 = vmatmul.mubr.f32.gmra.mxu0 %v275
        %v717 = vpop.f32.mrf.mxu0
        %v718 = vadd.f32 %v573, %v717
        %v719 = vpop.f32.mrf.mxu0
        %720 = vmatprep.mubr.f32.mxu0 %v282
        %721 = vmatmul.mubr.f32.gmra.mxu0 %v281
        %v722 = vpop.f32.mrf.mxu0
        %v723 = vadd.f32 %v578, %v722
        %v724 = vpop.f32.mrf.mxu0
        %725 = vmatprep.mubr.f32.mxu0 %v288
        %726 = vmatmul.mubr.f32.gmra.mxu0 %v287
        %v727 = vpop.f32.mrf.mxu0
        %v728 = vadd.f32 %v583, %v727
        %v729 = vpop.f32.mrf.mxu0
        %730 = vmatprep.mubr.f32.mxu0 %v294
        %731 = vmatmul.mubr.f32.gmra.mxu0 %v293
        %v732 = vpop.f32.mrf.mxu0
        %v733 = vadd.f32 %v588, %v732
        %v734 = vpop.f32.mrf.mxu0
        %735 = vmatprep.mubr.f32.mxu0 %v300
        %736 = vmatmul.mubr.f32.gmra.mxu0 %v299
        %v737 = vpop.f32.mrf.mxu0
        %v738 = vadd.f32 %v593, %v737
        %v739 = vpop.f32.mrf.mxu0
        %740 = vmatprep.mubr.f32.mxu0 %v306
        %741 = vmatmul.mubr.f32.gmra.mxu0 %v305
        %v742 = vpop.f32.mrf.mxu0
        %v743 = vadd.f32 %v598, %v742
        %v744 = vpop.f32.mrf.mxu0
        %745 = vmatprep.mubr.f32.mxu0 %v312
        %746 = vmatmul.mubr.f32.gmra.mxu0 %v311
        %v747 = vpop.f32.mrf.mxu0
        %v748 = vadd.f32 %v603, %v747
        %v749 = vpop.f32.mrf.mxu0
        %750 = vmatprep.mubr.f32.mxu0 %v318
        %751 = vmatmul.mubr.f32.gmra.mxu0 %v317
        %v752 = vpop.f32.mrf.mxu0
        %v753 = vadd.f32 %v608, %v752
        %v754 = vpop.f32.mrf.mxu0
        %755 = vmatprep.mubr.f32.mxu0 %v324
        %756 = vmatmul.mubr.f32.gmra.mxu0 %v323
        %v757 = vpop.f32.mrf.mxu0
        %v758 = vadd.f32 %v613, %v757
        %v759 = vpop.f32.mrf.mxu0
        %760 = vdwg.mxu0
        %761 = vmatprep.subr.mxu0 0.0
        %762 = vmatpush1.msra.mxu0 %v406
        %763 = vmatprep.subr.mxu0 0.0
        %764 = vmatpush1.msra.mxu0 %v405
        %765 = vmatprep.subr.mxu0 0.0
        %766 = vmatpush1.msra.mxu0 %v404
        %767 = vmatprep.subr.mxu0 0.0
        %768 = vmatpush1.msra.mxu0 %v403
        %769 = vmatprep.subr.mxu0 0.0
        %770 = vmatpush1.msra.mxu0 %v402
        %771 = vmatprep.subr.mxu0 0.0
        %772 = vmatpush1.msra.mxu0 %v401
        %773 = vmatprep.subr.mxu0 0.0
        %774 = vmatpush1.msra.mxu0 %v400
        %775 = vmatprep.subr.mxu0 0.0
        %776 = vmatpush1.msra.mxu0 %v399
        %777 = vmatprep.subr.mxu0 0.0
        %778 = vmatpush1.msra.mxu0 %v398
        %779 = vmatprep.subr.mxu0 0.0
        %780 = vmatpush1.msra.mxu0 %v397
        %781 = vmatprep.subr.mxu0 0.0
        %782 = vmatpush1.msra.mxu0 %v396
        %783 = vmatprep.subr.mxu0 0.0
        %784 = vmatpush1.msra.mxu0 %v395
        %785 = vmatprep.subr.mxu0 0.0
        %786 = vmatpush1.msra.mxu0 %v394
        %787 = vmatprep.subr.mxu0 0.0
        %788 = vmatpush1.msra.mxu0 %v393
        %789 = vmatprep.subr.mxu0 0.0
        %790 = vmatpush1.msra.mxu0 %v392
        %791 = vmatprep.subr.mxu0 0.0
        %792 = vmatpush1.msra.mxu0 %v391
        %793 = vmatprep.subr.mxu0 0.0
        %794 = vmatpush2.msra.mxu0 0.0
        %795 = vmatprep.subr.mxu0 0.0
        %796 = vmatpush2.msra.mxu0 0.0
        %797 = vmatprep.subr.mxu0 0.0
        %798 = vmatpush2.msra.mxu0 0.0
        %799 = vmatprep.subr.mxu0 0.0
        %800 = vmatpush2.msra.mxu0 0.0
        %801 = vmatprep.subr.mxu0 0.0
        %802 = vmatpush2.msra.mxu0 0.0
        %803 = vmatprep.subr.mxu0 0.0
        %804 = vmatpush2.msra.mxu0 %v469
        %805 = vmatprep.subr.mxu0 0.0
        %806 = vmatpush2.msra.mxu0 %v416
        %807 = vmatprep.subr.mxu0 0.0
        %808 = vmatpush2.msra.mxu0 %v415
        %809 = vmatprep.subr.mxu0 0.0
        %810 = vmatpush2.msra.mxu0 %v414
        %811 = vmatprep.subr.mxu0 0.0
        %812 = vmatpush2.msra.mxu0 %v413
        %813 = vmatprep.subr.mxu0 0.0
        %814 = vmatpush2.msra.mxu0 %v412
        %815 = vmatprep.subr.mxu0 0.0
        %816 = vmatpush2.msra.mxu0 %v411
        %817 = vmatprep.subr.mxu0 0.0
        %818 = vmatpush2.msra.mxu0 %v410
        %819 = vmatprep.subr.mxu0 0.0
        %820 = vmatpush2.msra.mxu0 %v409
        %821 = vmatprep.subr.mxu0 0.0
        %822 = vmatpush2.msra.mxu0 %v408
        %823 = vmatprep.subr.mxu0 0.0
        %824 = vmatpush2.msra.mxu0 %v407
        %825 = vmatprep.mubr.f32.mxu0 %v420
        %826 = vmatmul.mubr.f32.gmra.mxu0 %v235
        %v827 = vpop.f32.mrf.mxu0
        %v828 = vadd.f32 %v683, %v827
        %v829 = vpop.f32.mrf.mxu0
        %830 = vmatprep.mubr.f32.mxu0 %v423
        %831 = vmatmul.mubr.f32.gmra.mxu0 %v241
        %v832 = vpop.f32.mrf.mxu0
        %v833 = vadd.f32 %v688, %v832
        %v834 = vpop.f32.mrf.mxu0
        %835 = vmatprep.mubr.f32.mxu0 %v426
        %836 = vmatmul.mubr.f32.gmra.mxu0 %v247
        %v837 = vpop.f32.mrf.mxu0
        %v838 = vadd.f32 %v693, %v837
        %v839 = vpop.f32.mrf.mxu0
        %840 = vmatprep.mubr.f32.mxu0 %v429
        %841 = vmatmul.mubr.f32.gmra.mxu0 %v253
        %v842 = vpop.f32.mrf.mxu0
        %v843 = vadd.f32 %v698, %v842
        %v844 = vpop.f32.mrf.mxu0
        %845 = vmatprep.mubr.f32.mxu0 %v432
        %846 = vmatmul.mubr.f32.gmra.mxu0 %v259
        %v847 = vpop.f32.mrf.mxu0
        %v848 = vadd.f32 %v703, %v847
        %v849 = vpop.f32.mrf.mxu0
        %850 = vmatprep.mubr.f32.mxu0 %v435
        %851 = vmatmul.mubr.f32.gmra.mxu0 %v265
        %v852 = vpop.f32.mrf.mxu0
        %v853 = vadd.f32 %v708, %v852
        %v854 = vpop.f32.mrf.mxu0
        %855 = vmatprep.mubr.f32.mxu0 %v438
        %856 = vmatmul.mubr.f32.gmra.mxu0 %v271
        %v857 = vpop.f32.mrf.mxu0
        %v858 = vadd.f32 %v713, %v857
        %v859 = vpop.f32.mrf.mxu0
        %860 = vmatprep.mubr.f32.mxu0 %v441
        %861 = vmatmul.mubr.f32.gmra.mxu0 %v277
        %v862 = vpop.f32.mrf.mxu0
        %v863 = vadd.f32 %v718, %v862
        %v864 = vpop.f32.mrf.mxu0
        %865 = vmatprep.mubr.f32.mxu0 %v444
        %866 = vmatmul.mubr.f32.gmra.mxu0 %v283
        %v867 = vpop.f32.mrf.mxu0
        %v868 = vadd.f32 %v723, %v867
        %v869 = vpop.f32.mrf.mxu0
        %870 = vmatprep.mubr.f32.mxu0 %v447
        %871 = vmatmul.mubr.f32.gmra.mxu0 %v289
        %v872 = vpop.f32.mrf.mxu0
        %v873 = vadd.f32 %v728, %v872
        %v874 = vpop.f32.mrf.mxu0
        %875 = vmatprep.mubr.f32.mxu0 %v450
        %876 = vmatmul.mubr.f32.gmra.mxu0 %v295
        %v877 = vpop.f32.mrf.mxu0
        %v878 = vadd.f32 %v733, %v877
        %v879 = vpop.f32.mrf.mxu0
        %880 = vmatprep.mubr.f32.mxu0 %v453
        %881 = vmatmul.mubr.f32.gmra.mxu0 %v301
        %v882 = vpop.f32.mrf.mxu0
        %v883 = vadd.f32 %v738, %v882
        %v884 = vpop.f32.mrf.mxu0
        %885 = vmatprep.mubr.f32.mxu0 %v456
        %886 = vmatmul.mubr.f32.gmra.mxu0 %v307
        %v887 = vpop.f32.mrf.mxu0
        %v888 = vadd.f32 %v743, %v887
        %v889 = vpop.f32.mrf.mxu0
        %890 = vmatprep.mubr.f32.mxu0 %v459
        %891 = vmatmul.mubr.f32.gmra.mxu0 %v313
        %v892 = vpop.f32.mrf.mxu0
        %v893 = vadd.f32 %v748, %v892
        %v894 = vpop.f32.mrf.mxu0
        %895 = vmatprep.mubr.f32.mxu0 %v462
        %896 = vmatmul.mubr.f32.gmra.mxu0 %v319
        %v897 = vpop.f32.mrf.mxu0
        %v898 = vadd.f32 %v753, %v897
        %v899 = vpop.f32.mrf.mxu0
        %900 = vmatprep.mubr.f32.mxu0 %v465
        %901 = vmatmul.mubr.f32.gmra.mxu0 %v325
        %v902 = vpop.f32.mrf.mxu0
        %v903 = vadd.f32 %v758, %v902
        %v904 = vpop.f32.mrf.mxu0
        %905 = vdwg.mxu0
        %vm906 = vcmp.gt.f32.partialorder %v828, 0.0
        %vm907 = vcmp.gt.f32.partialorder %v833, 0.0
        %vm908 = vcmp.gt.f32.partialorder %v838, 0.0
        %vm909 = vcmp.gt.f32.partialorder %v843, 0.0
        %vm910 = vcmp.gt.f32.partialorder %v848, 0.0
        %vm911 = vcmp.gt.f32.partialorder %v853, 0.0
        %vm912 = vcmp.gt.f32.partialorder %v858, 0.0
        %vm913 = vcmp.gt.f32.partialorder %v863, 0.0
        %vm914 = vcmp.gt.f32.partialorder %v868, 0.0
        %vm915 = vcmp.gt.f32.partialorder %v873, 0.0
        %vm916 = vcmp.gt.f32.partialorder %v878, 0.0
        %vm917 = vcmp.gt.f32.partialorder %v883, 0.0
        %vm918 = vcmp.gt.f32.partialorder %v888, 0.0
        %vm919 = vcmp.gt.f32.partialorder %v893, 0.0
        %vm920 = vcmp.gt.f32.partialorder %v898, 0.0
        %vm921 = vcmp.gt.f32.partialorder %v903, 0.0
        %v922 = vmul.f32 %v828, 0.1
        %v923 = vmul.f32 %v833, 0.1
        %v924 = vmul.f32 %v838, 0.1
        %v925 = vmul.f32 %v843, 0.1
        %v926 = vmul.f32 %v848, 0.1
        %v927 = vmul.f32 %v853, 0.1
        %v928 = vmul.f32 %v858, 0.1
        %v929 = vmul.f32 %v863, 0.1
        %v930 = vmul.f32 %v868, 0.1
        %v931 = vmul.f32 %v873, 0.1
        %v932 = vmul.f32 %v878, 0.1
        %v933 = vmul.f32 %v883, 0.1
        %v934 = vmul.f32 %v888, 0.1
        %v935 = vmul.f32 %v893, 0.1
        %v936 = vmul.f32 %v898, 0.1
        %v937 = vmul.f32 %v903, 0.1
        %v938 = vsel %vm906, %v828, %v922
        %v939 = vsel %vm907, %v833, %v923
        %v940 = vsel %vm908, %v838, %v924
        %v941 = vsel %vm909, %v843, %v925
        %v942 = vsel %vm910, %v848, %v926
        %v943 = vsel %vm911, %v853, %v927
        %v944 = vsel %vm912, %v858, %v928
        %v945 = vsel %vm913, %v863, %v929
        %v946 = vsel %vm914, %v868, %v930
        %v947 = vsel %vm915, %v873, %v931
        %v948 = vsel %vm916, %v878, %v932
        %v949 = vsel %vm917, %v883, %v933
        %v950 = vsel %vm918, %v888, %v934
        %v951 = vsel %vm919, %v893, %v935
        %v952 = vsel %vm920, %v898, %v936
        %v953 = vsel %vm921, %v903, %v937
        %v954 = vld [vmem:[%s2] sm:$0xff]
        %v955 = vld [vmem:[%s2 + $0x8] sm:$0xff]
        %v956 = vld [vmem:[%s2 + $0x10] sm:$0xff]
        %v957 = vld [vmem:[%s2 + $0x18] sm:$0xff]
        %v958 = vld [vmem:[%s2 + $0x20] sm:$0xff]
        %v959 = vld [vmem:[%s2 + $0x28] sm:$0xff]
        %v960 = vld [vmem:[%s2 + $0x30] sm:$0xff]
        %v961 = vld [vmem:[%s2 + $0x38] sm:$0xff]
        %vm962 = vcmask 523264
        %v964 = vsel %vm962, %v938, 0
        %v967 = vsel %vm962, %v939, 0
        %v970 = vsel %vm962, %v940, 0
        %v973 = vsel %vm962, %v941, 0
        %v976 = vsel %vm962, %v942, 0
        %v979 = vsel %vm962, %v943, 0
        %v982 = vsel %vm962, %v944, 0
        %v985 = vsel %vm962, %v945, 0
        %v988 = vsel %vm962, %v946, 0
        %v991 = vsel %vm962, %v947, 0
        %v994 = vsel %vm962, %v948, 0
        %v997 = vsel %vm962, %v949, 0
        %v1000 = vsel %vm962, %v950, 0
        %v1003 = vsel %vm962, %v951, 0
        %v1006 = vsel %vm962, %v952, 0
        %v1009 = vsel %vm962, %v953, 0
        %1011 = vmatprep.subr.mxu0 0.0
        %1012 = vmatpush1.msra.mxu0 0.0
        %1013 = vmatprep.subr.mxu0 0.0
        %1014 = vmatpush1.msra.mxu0 0.0
        %1015 = vmatprep.subr.mxu0 0.0
        %1016 = vmatpush1.msra.mxu0 0.0
        %1017 = vmatprep.subr.mxu0 0.0
        %1018 = vmatpush1.msra.mxu0 0.0
        %1019 = vmatprep.subr.mxu0 0.0
        %1020 = vmatpush1.msra.mxu0 0.0
        %1021 = vmatprep.subr.mxu0 0.0
        %1022 = vmatpush1.msra.mxu0 0.0
        %1023 = vmatprep.subr.mxu0 0.0
        %1024 = vmatpush1.msra.mxu0 0.0
        %1025 = vmatprep.subr.mxu0 0.0
        %1026 = vmatpush1.msra.mxu0 0.0
        %1027 = vmatprep.subr.mxu0 0.0
        %1028 = vmatpush1.msra.mxu0 %v961
        %1029 = vmatprep.subr.mxu0 0.0
        %1030 = vmatpush1.msra.mxu0 %v960
        %1031 = vmatprep.subr.mxu0 0.0
        %1032 = vmatpush1.msra.mxu0 %v959
        %1033 = vmatprep.subr.mxu0 0.0
        %1034 = vmatpush1.msra.mxu0 %v958
        %1035 = vmatprep.subr.mxu0 0.0
        %1036 = vmatpush1.msra.mxu0 %v957
        %1037 = vmatprep.subr.mxu0 0.0
        %1038 = vmatpush1.msra.mxu0 %v956
        %1039 = vmatprep.subr.mxu0 0.0
        %1040 = vmatpush1.msra.mxu0 %v955
        %1041 = vmatprep.subr.mxu0 0.0
        %1042 = vmatpush1.msra.mxu0 %v954
        %1043 = vmatprep.subr.mxu0 0.0
        %1044 = vmatpush2.msra.mxu0 0.0
        %1045 = vmatprep.subr.mxu0 0.0
        %1046 = vmatpush2.msra.mxu0 0.0
        %1047 = vmatprep.subr.mxu0 0.0
        %1048 = vmatpush2.msra.mxu0 0.0
        %1049 = vmatprep.subr.mxu0 0.0
        %1050 = vmatpush2.msra.mxu0 0.0
        %1051 = vmatprep.subr.mxu0 0.0
        %1052 = vmatpush2.msra.mxu0 0.0
        %1053 = vmatprep.subr.mxu0 0.0
        %1054 = vmatpush2.msra.mxu0 0.0
        %1055 = vmatprep.subr.mxu0 0.0
        %1056 = vmatpush2.msra.mxu0 0.0
        %1057 = vmatprep.subr.mxu0 0.0
        %1058 = vmatpush2.msra.mxu0 0.0
        %1059 = vmatprep.subr.mxu0 0.0
        %1060 = vmatpush2.msra.mxu0 0.0
        %1061 = vmatprep.subr.mxu0 0.0
        %1062 = vmatpush2.msra.mxu0 0.0
        %1063 = vmatprep.subr.mxu0 0.0
        %1064 = vmatpush2.msra.mxu0 0.0
        %1065 = vmatprep.subr.mxu0 0.0
        %1066 = vmatpush2.msra.mxu0 0.0
        %1067 = vmatprep.subr.mxu0 0.0
        %1068 = vmatpush2.msra.mxu0 0.0
        %1069 = vmatprep.subr.mxu0 0.0
        %1070 = vmatpush2.msra.mxu0 0.0
        %1071 = vmatprep.subr.mxu0 0.0
        %1072 = vmatpush2.msra.mxu0 0.0
        %1073 = vmatprep.subr.mxu0 0.0
        %1074 = vmatpush2.msra.mxu0 0.0
        %1075 = vmatprep.mubr.f32.mxu0 0.0
        %1076 = vmatmul.mubr.f32.gmra.mxu0 %v964
        %v1077 = vpop.f32.mrf.mxu0
        %v1078 = vadd.f32 0.0, %v1077
        %v1079 = vpop.f32.mrf.mxu0
        %1080 = vmatprep.mubr.f32.mxu0 0.0
        %1081 = vmatmul.mubr.f32.gmra.mxu0 %v967
        %v1082 = vpop.f32.mrf.mxu0
        %v1083 = vadd.f32 0.0, %v1082
        %v1084 = vpop.f32.mrf.mxu0
        %1085 = vmatprep.mubr.f32.mxu0 0.0
        %1086 = vmatmul.mubr.f32.gmra.mxu0 %v970
        %v1087 = vpop.f32.mrf.mxu0
        %v1088 = vadd.f32 0.0, %v1087
        %v1089 = vpop.f32.mrf.mxu0
        %1090 = vmatprep.mubr.f32.mxu0 0.0
        %1091 = vmatmul.mubr.f32.gmra.mxu0 %v973
        %v1092 = vpop.f32.mrf.mxu0
        %v1093 = vadd.f32 0.0, %v1092
        %v1094 = vpop.f32.mrf.mxu0
        %1095 = vmatprep.mubr.f32.mxu0 0.0
        %1096 = vmatmul.mubr.f32.gmra.mxu0 %v976
        %v1097 = vpop.f32.mrf.mxu0
        %v1098 = vadd.f32 0.0, %v1097
        %v1099 = vpop.f32.mrf.mxu0
        %1100 = vmatprep.mubr.f32.mxu0 0.0
        %1101 = vmatmul.mubr.f32.gmra.mxu0 %v979
        %v1102 = vpop.f32.mrf.mxu0
        %v1103 = vadd.f32 0.0, %v1102
        %v1104 = vpop.f32.mrf.mxu0
        %1105 = vmatprep.mubr.f32.mxu0 0.0
        %1106 = vmatmul.mubr.f32.gmra.mxu0 %v982
        %v1107 = vpop.f32.mrf.mxu0
        %v1108 = vadd.f32 0.0, %v1107
        %v1109 = vpop.f32.mrf.mxu0
        %1110 = vmatprep.mubr.f32.mxu0 0.0
        %1111 = vmatmul.mubr.f32.gmra.mxu0 %v985
        %v1112 = vpop.f32.mrf.mxu0
        %v1113 = vadd.f32 0.0, %v1112
        %v1114 = vpop.f32.mrf.mxu0
        %1115 = vmatprep.mubr.f32.mxu0 0.0
        %1116 = vmatmul.mubr.f32.gmra.mxu0 %v988
        %v1117 = vpop.f32.mrf.mxu0
        %v1118 = vadd.f32 0.0, %v1117
        %v1119 = vpop.f32.mrf.mxu0
        %1120 = vmatprep.mubr.f32.mxu0 0.0
        %1121 = vmatmul.mubr.f32.gmra.mxu0 %v991
        %v1122 = vpop.f32.mrf.mxu0
        %v1123 = vadd.f32 0.0, %v1122
        %v1124 = vpop.f32.mrf.mxu0
        %1125 = vmatprep.mubr.f32.mxu0 0.0
        %1126 = vmatmul.mubr.f32.gmra.mxu0 %v994
        %v1127 = vpop.f32.mrf.mxu0
        %v1128 = vadd.f32 0.0, %v1127
        %v1129 = vpop.f32.mrf.mxu0
        %1130 = vmatprep.mubr.f32.mxu0 0.0
        %1131 = vmatmul.mubr.f32.gmra.mxu0 %v997
        %v1132 = vpop.f32.mrf.mxu0
        %v1133 = vadd.f32 0.0, %v1132
        %v1134 = vpop.f32.mrf.mxu0
        %1135 = vmatprep.mubr.f32.mxu0 0.0
        %1136 = vmatmul.mubr.f32.gmra.mxu0 %v1000
        %v1137 = vpop.f32.mrf.mxu0
        %v1138 = vadd.f32 0.0, %v1137
        %v1139 = vpop.f32.mrf.mxu0
        %1140 = vmatprep.mubr.f32.mxu0 0.0
        %1141 = vmatmul.mubr.f32.gmra.mxu0 %v1003
        %v1142 = vpop.f32.mrf.mxu0
        %v1143 = vadd.f32 0.0, %v1142
        %v1144 = vpop.f32.mrf.mxu0
        %1145 = vmatprep.mubr.f32.mxu0 0.0
        %1146 = vmatmul.mubr.f32.gmra.mxu0 %v1006
        %v1147 = vpop.f32.mrf.mxu0
        %v1148 = vadd.f32 0.0, %v1147
        %v1149 = vpop.f32.mrf.mxu0
        %1150 = vmatprep.mubr.f32.mxu0 0.0
        %1151 = vmatmul.mubr.f32.gmra.mxu0 %v1009
        %v1152 = vpop.f32.mrf.mxu0
        %v1153 = vadd.f32 0.0, %v1152
        %v1154 = vpop.f32.mrf.mxu0
        %1155 = vdwg.mxu0
        %vm1156 = vcmp.gt.f32.partialorder %v1078, 0.0
        %vm1157 = vcmp.gt.f32.partialorder %v1083, 0.0
        %vm1158 = vcmp.gt.f32.partialorder %v1088, 0.0
        %vm1159 = vcmp.gt.f32.partialorder %v1093, 0.0
        %vm1160 = vcmp.gt.f32.partialorder %v1098, 0.0
        %vm1161 = vcmp.gt.f32.partialorder %v1103, 0.0
        %vm1162 = vcmp.gt.f32.partialorder %v1108, 0.0
        %vm1163 = vcmp.gt.f32.partialorder %v1113, 0.0
        %vm1164 = vcmp.gt.f32.partialorder %v1118, 0.0
        %vm1165 = vcmp.gt.f32.partialorder %v1123, 0.0
        %vm1166 = vcmp.gt.f32.partialorder %v1128, 0.0
        %vm1167 = vcmp.gt.f32.partialorder %v1133, 0.0
        %vm1168 = vcmp.gt.f32.partialorder %v1138, 0.0
        %vm1169 = vcmp.gt.f32.partialorder %v1143, 0.0
        %vm1170 = vcmp.gt.f32.partialorder %v1148, 0.0
        %vm1171 = vcmp.gt.f32.partialorder %v1153, 0.0
        %v1172 = vmul.f32 %v1078, 0.1
        %v1173 = vmul.f32 %v1083, 0.1
        %v1174 = vmul.f32 %v1088, 0.1
        %v1175 = vmul.f32 %v1093, 0.1
        %v1176 = vmul.f32 %v1098, 0.1
        %v1177 = vmul.f32 %v1103, 0.1
        %v1178 = vmul.f32 %v1108, 0.1
        %v1179 = vmul.f32 %v1113, 0.1
        %v1180 = vmul.f32 %v1118, 0.1
        %v1181 = vmul.f32 %v1123, 0.1
        %v1182 = vmul.f32 %v1128, 0.1
        %v1183 = vmul.f32 %v1133, 0.1
        %v1184 = vmul.f32 %v1138, 0.1
        %v1185 = vmul.f32 %v1143, 0.1
        %v1186 = vmul.f32 %v1148, 0.1
        %v1187 = vmul.f32 %v1153, 0.1
        %v1188 = vsel %vm1156, %v1078, %v1172
        %v1189 = vsel %vm1157, %v1083, %v1173
        %v1190 = vsel %vm1158, %v1088, %v1174
        %v1191 = vsel %vm1159, %v1093, %v1175
        %v1192 = vsel %vm1160, %v1098, %v1176
        %v1193 = vsel %vm1161, %v1103, %v1177
        %v1194 = vsel %vm1162, %v1108, %v1178
        %v1195 = vsel %vm1163, %v1113, %v1179
        %v1196 = vsel %vm1164, %v1118, %v1180
        %v1197 = vsel %vm1165, %v1123, %v1181
        %v1198 = vsel %vm1166, %v1128, %v1182
        %v1199 = vsel %vm1167, %v1133, %v1183
        %v1200 = vsel %vm1168, %v1138, %v1184
        %v1201 = vsel %vm1169, %v1143, %v1185
        %v1202 = vsel %vm1170, %v1148, %v1186
        %v1203 = vsel %vm1171, %v1153, %v1187
        %v1204 = vld [vmem:[%s3] sm:$0x1]
        %v1206 = vlaneseq
        %v1207 = vshrl.u32 %v1206, 7
        %v1208 = vsub.s32 0, %v1207
        %v1209 = vrot.slane %v1204, %v1208
        %v1211 = vmul.f32 %v1188, %v1209
        %v1212 = vmul.f32 %v1189, %v1209
        %v1213 = vmul.f32 %v1190, %v1209
        %v1214 = vmul.f32 %v1191, %v1209
        %v1215 = vmul.f32 %v1192, %v1209
        %v1216 = vmul.f32 %v1193, %v1209
        %v1217 = vmul.f32 %v1194, %v1209
        %v1218 = vmul.f32 %v1195, %v1209
        %v1219 = vmul.f32 %v1196, %v1209
        %v1220 = vmul.f32 %v1197, %v1209
        %v1221 = vmul.f32 %v1198, %v1209
        %v1222 = vmul.f32 %v1199, %v1209
        %v1223 = vmul.f32 %v1200, %v1209
        %v1224 = vmul.f32 %v1201, %v1209
        %v1225 = vmul.f32 %v1202, %v1209
        %v1226 = vmul.f32 %v1203, %v1209
        %v1227 = vsel %vm962, %v1211, 0.0
        %1228 = vadd.xlane.f32.xlu0 %v1227
        %v1229 = vpop.xlane.xlu0 %1228
        %v1230 = vsel %vm962, %v1212, 0.0
        %1231 = vadd.xlane.f32.xlu0 %v1230
        %v1232 = vpop.xlane.xlu0 %1231
        %v1233 = vsel %vm962, %v1213, 0.0
        %1234 = vadd.xlane.f32.xlu0 %v1233
        %v1235 = vpop.xlane.xlu0 %1234
        %v1236 = vsel %vm962, %v1214, 0.0
        %1237 = vadd.xlane.f32.xlu0 %v1236
        %v1238 = vpop.xlane.xlu0 %1237
        %v1239 = vsel %vm962, %v1215, 0.0
        %1240 = vadd.xlane.f32.xlu0 %v1239
        %v1241 = vpop.xlane.xlu0 %1240
        %v1242 = vsel %vm962, %v1216, 0.0
        %1243 = vadd.xlane.f32.xlu0 %v1242
        %v1244 = vpop.xlane.xlu0 %1243
        %v1245 = vsel %vm962, %v1217, 0.0
        %1246 = vadd.xlane.f32.xlu0 %v1245
        %v1247 = vpop.xlane.xlu0 %1246
        %v1248 = vsel %vm962, %v1218, 0.0
        %1249 = vadd.xlane.f32.xlu0 %v1248
        %v1250 = vpop.xlane.xlu0 %1249
        %v1251 = vsel %vm962, %v1219, 0.0
        %1252 = vadd.xlane.f32.xlu0 %v1251
        %v1253 = vpop.xlane.xlu0 %1252
        %v1254 = vsel %vm962, %v1220, 0.0
        %1255 = vadd.xlane.f32.xlu0 %v1254
        %v1256 = vpop.xlane.xlu0 %1255
        %v1257 = vsel %vm962, %v1221, 0.0
        %1258 = vadd.xlane.f32.xlu0 %v1257
        %v1259 = vpop.xlane.xlu0 %1258
        %v1260 = vsel %vm962, %v1222, 0.0
        %1261 = vadd.xlane.f32.xlu0 %v1260
        %v1262 = vpop.xlane.xlu0 %1261
        %v1263 = vsel %vm962, %v1223, 0.0
        %1264 = vadd.xlane.f32.xlu0 %v1263
        %v1265 = vpop.xlane.xlu0 %1264
        %v1266 = vsel %vm962, %v1224, 0.0
        %1267 = vadd.xlane.f32.xlu0 %v1266
        %v1268 = vpop.xlane.xlu0 %1267
        %v1269 = vsel %vm962, %v1225, 0.0
        %1270 = vadd.xlane.f32.xlu0 %v1269
        %v1271 = vpop.xlane.xlu0 %1270
        %v1272 = vsel %vm962, %v1226, 0.0
        %1273 = vadd.xlane.f32.xlu0 %v1272
        %v1274 = vpop.xlane.xlu0 %1273
        %vm1275 = vcmask 7168
        %1276 = vst.msk [vmem:[%s219] sm:$0xff] %vm1275, %v1229
        %1277 = vst.msk [vmem:[%s219 + $0x8] sm:$0xff] %vm1275, %v1232
        %1278 = vst.msk [vmem:[%s219 + $0x10] sm:$0xff] %vm1275, %v1235
        %1279 = vst.msk [vmem:[%s219 + $0x18] sm:$0xff] %vm1275, %v1238
        %1280 = vst.msk [vmem:[%s219 + $0x20] sm:$0xff] %vm1275, %v1241
        %1281 = vst.msk [vmem:[%s219 + $0x28] sm:$0xff] %vm1275, %v1244
        %1282 = vst.msk [vmem:[%s219 + $0x30] sm:$0xff] %vm1275, %v1247
        %1283 = vst.msk [vmem:[%s219 + $0x38] sm:$0xff] %vm1275, %v1250
        %1284 = vst.msk [vmem:[%s219 + $0x40] sm:$0xff] %vm1275, %v1253
        %1285 = vst.msk [vmem:[%s219 + $0x48] sm:$0xff] %vm1275, %v1256
        %1286 = vst.msk [vmem:[%s219 + $0x50] sm:$0xff] %vm1275, %v1259
        %1287 = vst.msk [vmem:[%s219 + $0x58] sm:$0xff] %vm1275, %v1262
        %1288 = vst.msk [vmem:[%s219 + $0x60] sm:$0xff] %vm1275, %v1265
        %1289 = vst.msk [vmem:[%s219 + $0x68] sm:$0xff] %vm1275, %v1268
        %1290 = vst.msk [vmem:[%s219 + $0x70] sm:$0xff] %vm1275, %v1271
        %1291 = vst.msk [vmem:[%s219 + $0x78] sm:$0xff] %vm1275, %v1274
        %s1292 = sand.u32 %s115, 1
        %s1293 = sand.u32 %s115, 1
        %s1294 = smul.addr %s1293, 128
        %s1295 = scalar_lea.vmem [#allocation4], %s1294
        // Predicated region
        $region41: #{tpu_custom_call.1} parent=35 // pred_check
          %p1296 = pneg %p125
        $region42: #{tpu_custom_call.1} parent=35 // pred_check_branch
          %1298 = sbr.rel (%p1296) target = $region44
        $region43: #{tpu_custom_call.1} parent=35 // pred_region
          %s1299 = smul.u32 16, %s18
          %s1300 = ssub.s32 38, %s1299
          %p1301 = scmp.lt.s32.totalorder %s1300, 16
          %s1302 = scalar_select %p1301, %s1300, 16
          %s1303 = smul.u32 128, %s1302
          %p1304 = scmp.ne.s32.totalorder 0, %s1303
          %s1305 = smul.addr %s1299, 8
          %s1306 = scalar_lea.vmem %s4, %s1305
          // Predicated region
          $region45: #{tpu_custom_call.1} parent=43 // pred_check
            %p1307 = pneg %p1304
          $region46: #{tpu_custom_call.1} parent=43 // pred_check_branch
            %1309 = sbr.rel (%p1307) target = $region48
          $region47: #{tpu_custom_call.1} parent=43 // pred_region
            // Predicated region
            $region49: #{tpu_custom_call.1} parent=47 // pred_check
              _
            $region50: #{tpu_custom_call.1} parent=47 // pred_check_branch
              %1311 = sbr.rel (0) target = $region52
            $region51: #{tpu_custom_call.1} parent=47 // pred_region
              // Predicated region
              $region71: #{tpu_custom_call.1} parent=51 // pred_check
                _
              $region72: #{tpu_custom_call.1} parent=51 // pred_check_branch
                %1391 = sbr.rel (0) target = $region74
              $region73: #{tpu_custom_call.1} parent=51 // pred_region
                %s1392 = sshrl.u32 %s1302, 4
                // While loop
                $region75: #{tpu_custom_call.1} parent=73 // loop_pre_header
                  _
                $region76: #{tpu_custom_call.1} parent=73 // loop_header
                  %s1394 = sphi 0, %s1396
                  %p1395 = scmp.ge.s32.totalorder %s1394, %s1392
                  %s1399 = sphi 0, %s1436
                  %s1400 = sphi %s1295, %s1439
                  %s1401 = sphi %s1306, %s1440
                $region77: #{tpu_custom_call.1} parent=73 // loop_header_branch
                  %1398 = sbr.rel (%p1395) target = $region81
                $region78: #{tpu_custom_call.1} parent=73 // loop_body
                  %v1402 = vld [vmem:[%s1400] sm:$0xff]
                  %1403 = vst [vmem:[%s1401] sm:$0xff] %v1402
                  %v1404 = vld [vmem:[%s1400 + $0x8] sm:$0xff]
                  %1405 = vst [vmem:[%s1401 + $0x8] sm:$0xff] %v1404
                  %v1406 = vld [vmem:[%s1400 + $0x10] sm:$0xff]
                  %1407 = vst [vmem:[%s1401 + $0x10] sm:$0xff] %v1406
                  %v1408 = vld [vmem:[%s1400 + $0x18] sm:$0xff]
                  %1409 = vst [vmem:[%s1401 + $0x18] sm:$0xff] %v1408
                  %v1410 = vld [vmem:[%s1400 + $0x20] sm:$0xff]
                  %1411 = vst [vmem:[%s1401 + $0x20] sm:$0xff] %v1410
                  %v1412 = vld [vmem:[%s1400 + $0x28] sm:$0xff]
                  %1413 = vst [vmem:[%s1401 + $0x28] sm:$0xff] %v1412
                  %v1414 = vld [vmem:[%s1400 + $0x30] sm:$0xff]
                  %1415 = vst [vmem:[%s1401 + $0x30] sm:$0xff] %v1414
                  %v1416 = vld [vmem:[%s1400 + $0x38] sm:$0xff]
                  %1417 = vst [vmem:[%s1401 + $0x38] sm:$0xff] %v1416
                  %v1418 = vld [vmem:[%s1400 + $0x40] sm:$0xff]
                  %1419 = vst [vmem:[%s1401 + $0x40] sm:$0xff] %v1418
                  %v1420 = vld [vmem:[%s1400 + $0x48] sm:$0xff]
                  %1421 = vst [vmem:[%s1401 + $0x48] sm:$0xff] %v1420
                  %v1422 = vld [vmem:[%s1400 + $0x50] sm:$0xff]
                  %1423 = vst [vmem:[%s1401 + $0x50] sm:$0xff] %v1422
                  %v1424 = vld [vmem:[%s1400 + $0x58] sm:$0xff]
                  %1425 = vst [vmem:[%s1401 + $0x58] sm:$0xff] %v1424
                  %v1426 = vld [vmem:[%s1400 + $0x60] sm:$0xff]
                  %1427 = vst [vmem:[%s1401 + $0x60] sm:$0xff] %v1426
                  %v1428 = vld [vmem:[%s1400 + $0x68] sm:$0xff]
                  %1429 = vst [vmem:[%s1401 + $0x68] sm:$0xff] %v1428
                  %v1430 = vld [vmem:[%s1400 + $0x70] sm:$0xff]
                  %1431 = vst [vmem:[%s1401 + $0x70] sm:$0xff] %v1430
                  %v1432 = vld [vmem:[%s1400 + $0x78] sm:$0xff]
                  %1433 = vst [vmem:[%s1401 + $0x78] sm:$0xff] %v1432
                  %s1434 = sadd.s32 1, %s1399
                  %p1435 = scmp.ge.s32.totalorder %s1434, %s1392
                  %s1436 = scalar_select %p1435, 0, %s1434
                  %s1437 = smul.u32 %s1436, 128
                  %s1438 = smul.u32 %s1436, 128
                  %s1439 = scalar_lea.vmem %s1295, %s1437 [#allocation4]
                  %s1440 = scalar_lea.vmem %s1306, %s1438
                $region79: #{tpu_custom_call.1} parent=73 // loop_footer
                  %s1396 = sadd.s32 %s1394, 1
                $region80: #{tpu_custom_call.1} parent=73 // loop_footer_branch
                  %1393 = sbr.rel target = $region76
                $region81: #{tpu_custom_call.1} parent=73 // loop_exit
                  _
                %s1441 = sshrl.u32 %s1302, 4
                %s1442 = sand.u32 %s1302, 15
                %s1443 = smul.u32 %s1441, 16
                %s1444 = smul.u32 8, %s1443
                %s1445 = scalar_lea.vmem %s1295, %s1444 [#allocation4]
                %s1446 = smul.u32 8, %s1443
                %s1447 = scalar_lea.vmem %s1306, %s1446
                // While loop
                $region82: #{tpu_custom_call.1} parent=73 // loop_pre_header
                  _
                $region83: #{tpu_custom_call.1} parent=73 // loop_header
                  %s1449 = sphi 0, %s1451
                  %p1450 = scmp.ge.s32.totalorder %s1449, %s1442
                  %s1454 = sphi 0, %s1461
                  %s1455 = sphi %s1445, %s1464
                  %s1456 = sphi %s1447, %s1465
                $region84: #{tpu_custom_call.1} parent=73 // loop_header_branch
                  %1453 = sbr.rel (%p1450) target = $region88
                $region85: #{tpu_custom_call.1} parent=73 // loop_body
                  %v1457 = vld [vmem:[%s1455] sm:$0xff]
                  %1458 = vst [vmem:[%s1456] sm:$0xff] %v1457
                  %s1459 = sadd.s32 1, %s1454
                  %p1460 = scmp.ge.s32.totalorder %s1459, %s1442
                  %s1461 = scalar_select %p1460, 0, %s1459
                  %s1462 = smul.u32 %s1461, 8
                  %s1463 = smul.u32 %s1461, 8
                  %s1464 = scalar_lea.vmem %s1445, %s1462 [#allocation4]
                  %s1465 = scalar_lea.vmem %s1447, %s1463
                $region86: #{tpu_custom_call.1} parent=73 // loop_footer
                  %s1451 = sadd.s32 %s1449, 1
                $region87: #{tpu_custom_call.1} parent=73 // loop_footer_branch
                  %1448 = sbr.rel target = $region83
                $region88: #{tpu_custom_call.1} parent=73 // loop_exit
                  _
              $region74: #{tpu_custom_call.1} parent=51 // pred_fallthru
                _
              // Predicated region
              $region89: #{tpu_custom_call.1} parent=51 // pred_check
                _
              $region90: #{tpu_custom_call.1} parent=51 // pred_check_branch
                %1467 = sbr.rel target = $region92
              $region91: #{tpu_custom_call.1} parent=51 // pred_region
                _
              $region92: #{tpu_custom_call.1} parent=51 // pred_fallthru
                _
            $region52: #{tpu_custom_call.1} parent=47 // pred_fallthru
              _
            // Predicated region
            $region53: #{tpu_custom_call.1} parent=47 // pred_check
              _
            $region54: #{tpu_custom_call.1} parent=47 // pred_check_branch
              %1313 = sbr.rel target = $region56
            $region55: #{tpu_custom_call.1} parent=47 // pred_region
              %s1315 = ssub.s32 256, 1
              %s1316 = sshrl.u32 %s1302, 4
              // While loop
              $region57: #{tpu_custom_call.1} parent=55 // loop_pre_header
                _
              $region58: #{tpu_custom_call.1} parent=55 // loop_header
                %s1318 = sphi 0, %s1320
                %p1319 = scmp.ge.s32.totalorder %s1318, %s1316
                %s1323 = sphi 0, %s1360
                %s1324 = sphi %s1295, %s1363
                %s1325 = sphi %s1306, %s1364
              $region59: #{tpu_custom_call.1} parent=55 // loop_header_branch
                %1322 = sbr.rel (%p1319) target = $region63
              $region60: #{tpu_custom_call.1} parent=55 // loop_body
                %v1326 = vld [vmem:[%s1324] sm:%s1315]
                %1327 = vst [vmem:[%s1325] sm:%s1315] %v1326
                %v1328 = vld [vmem:[%s1324 + $0x8] sm:%s1315]
                %1329 = vst [vmem:[%s1325 + $0x8] sm:%s1315] %v1328
                %v1330 = vld [vmem:[%s1324 + $0x10] sm:%s1315]
                %1331 = vst [vmem:[%s1325 + $0x10] sm:%s1315] %v1330
                %v1332 = vld [vmem:[%s1324 + $0x18] sm:%s1315]
                %1333 = vst [vmem:[%s1325 + $0x18] sm:%s1315] %v1332
                %v1334 = vld [vmem:[%s1324 + $0x20] sm:%s1315]
                %1335 = vst [vmem:[%s1325 + $0x20] sm:%s1315] %v1334
                %v1336 = vld [vmem:[%s1324 + $0x28] sm:%s1315]
                %1337 = vst [vmem:[%s1325 + $0x28] sm:%s1315] %v1336
                %v1338 = vld [vmem:[%s1324 + $0x30] sm:%s1315]
                %1339 = vst [vmem:[%s1325 + $0x30] sm:%s1315] %v1338
                %v1340 = vld [vmem:[%s1324 + $0x38] sm:%s1315]
                %1341 = vst [vmem:[%s1325 + $0x38] sm:%s1315] %v1340
                %v1342 = vld [vmem:[%s1324 + $0x40] sm:%s1315]
                %1343 = vst [vmem:[%s1325 + $0x40] sm:%s1315] %v1342
                %v1344 = vld [vmem:[%s1324 + $0x48] sm:%s1315]
                %1345 = vst [vmem:[%s1325 + $0x48] sm:%s1315] %v1344
                %v1346 = vld [vmem:[%s1324 + $0x50] sm:%s1315]
                %1347 = vst [vmem:[%s1325 + $0x50] sm:%s1315] %v1346
                %v1348 = vld [vmem:[%s1324 + $0x58] sm:%s1315]
                %1349 = vst [vmem:[%s1325 + $0x58] sm:%s1315] %v1348
                %v1350 = vld [vmem:[%s1324 + $0x60] sm:%s1315]
                %1351 = vst [vmem:[%s1325 + $0x60] sm:%s1315] %v1350
                %v1352 = vld [vmem:[%s1324 + $0x68] sm:%s1315]
                %1353 = vst [vmem:[%s1325 + $0x68] sm:%s1315] %v1352
                %v1354 = vld [vmem:[%s1324 + $0x70] sm:%s1315]
                %1355 = vst [vmem:[%s1325 + $0x70] sm:%s1315] %v1354
                %v1356 = vld [vmem:[%s1324 + $0x78] sm:%s1315]
                %1357 = vst [vmem:[%s1325 + $0x78] sm:%s1315] %v1356
                %s1358 = sadd.s32 1, %s1323
                %p1359 = scmp.ge.s32.totalorder %s1358, %s1316
                %s1360 = scalar_select %p1359, 0, %s1358
                %s1361 = smul.u32 %s1360, 128
                %s1362 = smul.u32 %s1360, 128
                %s1363 = scalar_lea.vmem %s1295, %s1361 [#allocation4]
                %s1364 = scalar_lea.vmem %s1306, %s1362
              $region61: #{tpu_custom_call.1} parent=55 // loop_footer
                %s1320 = sadd.s32 %s1318, 1
              $region62: #{tpu_custom_call.1} parent=55 // loop_footer_branch
                %1317 = sbr.rel target = $region58
              $region63: #{tpu_custom_call.1} parent=55 // loop_exit
                _
              %s1365 = sshrl.u32 %s1302, 4
              %s1366 = sand.u32 %s1302, 15
              %s1367 = smul.u32 %s1365, 16
              %s1368 = smul.u32 8, %s1367
              %s1369 = scalar_lea.vmem %s1295, %s1368 [#allocation4]
              %s1370 = smul.u32 8, %s1367
              %s1371 = scalar_lea.vmem %s1306, %s1370
              // While loop
              $region64: #{tpu_custom_call.1} parent=55 // loop_pre_header
                _
              $region65: #{tpu_custom_call.1} parent=55 // loop_header
                %s1373 = sphi 0, %s1375
                %p1374 = scmp.ge.s32.totalorder %s1373, %s1366
                %s1378 = sphi 0, %s1385
                %s1379 = sphi %s1369, %s1388
                %s1380 = sphi %s1371, %s1389
              $region66: #{tpu_custom_call.1} parent=55 // loop_header_branch
                %1377 = sbr.rel (%p1374) target = $region70
              $region67: #{tpu_custom_call.1} parent=55 // loop_body
                %v1381 = vld [vmem:[%s1379] sm:%s1315]
                %1382 = vst [vmem:[%s1380] sm:%s1315] %v1381
                %s1383 = sadd.s32 1, %s1378
                %p1384 = scmp.ge.s32.totalorder %s1383, %s1366
                %s1385 = scalar_select %p1384, 0, %s1383
                %s1386 = smul.u32 %s1385, 8
                %s1387 = smul.u32 %s1385, 8
                %s1388 = scalar_lea.vmem %s1369, %s1386 [#allocation4]
                %s1389 = scalar_lea.vmem %s1371, %s1387
              $region68: #{tpu_custom_call.1} parent=55 // loop_footer
                %s1375 = sadd.s32 %s1373, 1
              $region69: #{tpu_custom_call.1} parent=55 // loop_footer_branch
                %1372 = sbr.rel target = $region65
              $region70: #{tpu_custom_call.1} parent=55 // loop_exit
                _
            $region56: #{tpu_custom_call.1} parent=47 // pred_fallthru
              _
          $region48: #{tpu_custom_call.1} parent=43 // pred_fallthru
            _
          %1468 = vnop
        $region44: #{tpu_custom_call.1} parent=35 // pred_fallthru
          _
      $region36: #{tpu_custom_call.1} parent=5 // pred_fallthru
        _
      %p1469 = scmp.le.s32.totalorder 2, %s13
      // Predicated region
      $region93: #{tpu_custom_call.1} parent=5 // pred_check
        %p1470 = pneg %p1469
      $region94: #{tpu_custom_call.1} parent=5 // pred_check_branch
        %1472 = sbr.rel (%p1470) target = $region96
      $region95: #{tpu_custom_call.1} parent=5 // pred_region
        %s1473 = ssub.s32 %s13, 2
        // Predicated region
        $region97: #{tpu_custom_call.1} parent=95 // pred_check
          %p1474 = pneg %p131
        $region98: #{tpu_custom_call.1} parent=95 // pred_check_branch
          %1476 = sbr.rel (%p1474) target = $region100
        $region99: #{tpu_custom_call.1} parent=95 // pred_region
          %s1477 = sand.u32 %s116, 1
          %s1478 = sand.u32 %s116, 1
          %s1479 = smul.addr %s1478, 128
          %s1480 = scalar_lea.vmem [#allocation4], %s1479
        $region100: #{tpu_custom_call.1} parent=95 // pred_fallthru
          _
      $region96: #{tpu_custom_call.1} parent=5 // pred_fallthru
        _
    $region6: #{tpu_custom_call.1} parent=1 // loop_footer
      %s17 = sadd.s32 1, %s13
    $region7: #{tpu_custom_call.1} parent=1 // loop_footer_branch
      %12 = sbr.rel target = $region3
    $region8: #{tpu_custom_call.1} parent=1 // loop_exit
      _
    %1481 = vsyncpa [#allocation3], 1
    %s1482 = scalar_lea.sflag [#allocation3], 1
    %1483 = vsyncpa %s1482, 1

</llo_original>
